<compile_context>
chip_gen: v7x
topology: tpu7x:2x2x1
jax: 0.10.0
libtpu: 0.0.40
codegen_flags: <defaults>
</compile_context>

<pallas_src>
import math

import jax
import jax.numpy as jnp
from jax.experimental import pallas as pl
from jax.experimental.pallas import tpu as pltpu


_VMEM = pl.BlockSpec(memory_space=pltpu.MemorySpace.VMEM)


# ----------------------------------------------------------------------------
# single fused kernel: conv1 -> conv2 -> pool -> hard_fc1 -> cl_loss + fc head
# ----------------------------------------------------------------------------
def gcn_net_kernel(x0_ref, a_tall_ref, a_blk_ref, pool_ref,
                   wpack_ref, vpack_ref, fcpack_ref, yneq_ref,
                   logits_ref, loss_ref):
    IN = x0_ref.shape[1]            # in_feats
    W = vpack_ref.shape[1]          # hid_feats == out_feats (packed width)
    n = pool_ref.shape[0]           # 2G rows (both branches stacked)
    half = n // 2

    # ---- static slices of the packed parameter slabs ----
    c1w = wpack_ref[0:IN, :]                     # (in,  hid)
    c2w = wpack_ref[IN:IN + W, :]                # (hid, out)
    hw1 = wpack_ref[IN + W:IN + 2 * W, :]        # (out, out)
    hw2 = wpack_ref[IN + 2 * W:IN + 3 * W, :]    # (out, out)
    c1b = vpack_ref[0:1, :]
    c2b = vpack_ref[1:2, :]
    hb1 = vpack_ref[2:3, :]
    hb2 = vpack_ref[3:4, :]
    gamma = vpack_ref[4:5, :]
    beta = vpack_ref[5:6, :]
    fcw_g = fcpack_ref[0:W, :]                   # (out, 128), zero-padded cols
    fcw_t = fcpack_ref[W:2 * W, :]               # (out, 128)
    fcb = fcpack_ref[2 * W:2 * W + 1, :]         # (1, 128), -1e30 in padded cols

    # ---- both GCN branches at once (branch-stacked rows) ----
    # shared first-layer projection (eval mode: both branches read x0)
    h0 = jnp.dot(x0_ref[...], c1w, preferred_element_type=jnp.float32)      # (N, hid)
    # conv1: relu([A1; A2] @ (x0 @ W1) + b1)                                -> (2N, hid)
    h1 = jnp.maximum(
        jnp.dot(a_tall_ref[...], h0, preferred_element_type=jnp.float32) + c1b, 0.0)
    # conv2: relu(blockdiag(A1, A2) @ (h1 @ W2) + b2)                       -> (2N, out)
    h1w = jnp.dot(h1, c2w, preferred_element_type=jnp.float32)
    h2 = jnp.maximum(
        jnp.dot(a_blk_ref[...], h1w, preferred_element_type=jnp.float32) + c2b, 0.0)
    # scatter_mean -> per-graph embeddings for both branches                -> (2G, out)
    g = jnp.dot(pool_ref[...], h2, preferred_element_type=jnp.float32)
    # hard_fc1 (Dropout p=0 is a no-op): LayerNorm(w2(relu(w1(g))) + g)
    t = jnp.maximum(jnp.dot(g, hw1, preferred_element_type=jnp.float32) + hb1, 0.0)
    t = jnp.dot(t, hw2, preferred_element_type=jnp.float32) + hb2 + g
    mu = jnp.mean(t, axis=-1, keepdims=True)
    var = jnp.mean((t - mu) ** 2, axis=-1, keepdims=True)
    t = (t - mu) * jax.lax.rsqrt(var + 1e-6) * gamma + beta
    # logical x = [g | t]  (2G, 2*out); kept as the (g, t) pair, never stored.

    # ---- contrastive loss (exact log form, no divide, no transposes) ----
    sq = jnp.sum(g * g, axis=1, keepdims=True) + jnp.sum(t * t, axis=1, keepdims=True)
    inv_norm = jax.lax.rsqrt(sq + 1e-12)                  # 1 / ||x_i||
    scale_l = inv_norm * (1.0 / 0.3)                      # fold temperature t=0.3
    dims = (((1,), (1,)), ((), ()))                       # A @ B.T via dot_general
    sim = (jax.lax.dot_general(g * scale_l, g * inv_norm, dims,
                               preferred_element_type=jnp.float32) +
           jax.lax.dot_general(t * scale_l, t * inv_norm, dims,
                               preferred_element_type=jnp.float32))       # (n, n)
    expm = jnp.exp(sim)
    rows = jax.lax.broadcasted_iota(jnp.int32, (n, n), 0)
    cols = jax.lax.broadcasted_iota(jnp.int32, (n, n), 1)
    expm = jnp.where(rows == cols, 0.0, expm)             # remove the diagonal
    y_neq = yneq_ref[...]                                 # (n, n): 1 where labels differ
    neg_sum = jnp.sum(expm * y_neq, axis=1, keepdims=True)            # (n, 1)
    pos_sum = jnp.sum(expm * (1.0 - y_neq), axis=1, keepdims=True)    # (n, 1)
    #   -sum(log((pos/neg)/128))  ==  sum(log(neg) - log(pos)) + half*log(128)
    #   (the /128 is a hard-coded constant taken verbatim from the reference)
    per_row = jnp.log(neg_sum[:half, :]) - jnp.log(pos_sum[:half, :])
    loss_ref[...] = jnp.sum(per_row, keepdims=True) + half * math.log(128.0)

    # ---- fc + log_softmax (lane-dense, padded to 128 output columns) ----
    z = (jnp.dot(g, fcw_g, preferred_element_type=jnp.float32) +
         jnp.dot(t, fcw_t, preferred_element_type=jnp.float32) + fcb)     # (2G, 128)
    m = jnp.max(z, axis=-1, keepdims=True)
    lse = jnp.log(jnp.sum(jnp.exp(z - m), axis=-1, keepdims=True)) + m
    logits_ref[...] = z - lse                             # one unmasked full store


# ----------------------------------------------------------------------------
# wrapper: one pallas_call for the whole eval-mode forward
# ----------------------------------------------------------------------------
def gcn_net_forward(wpack, vpack, fcpack, x0, a_tall, a_blk, pool_blk, y1, y2,
                    num_classes=4):
    G2 = pool_blk.shape[0]                         # 2G
    y = jnp.concatenate([y1, y2], axis=0)
    y_neq = (y[:, None] != y[None, :]).astype(jnp.float32)     # (2G, 2G)

    logits_pad, cl_loss = pl.pallas_call(
        gcn_net_kernel,
        out_shape=(jax.ShapeDtypeStruct((G2, 128), jnp.float32),
                   jax.ShapeDtypeStruct((1, 1), jnp.float32)),
        in_specs=[_VMEM] * 8,
        out_specs=(_VMEM, _VMEM),
    )(x0, a_tall, a_blk, pool_blk, wpack, vpack, fcpack, y_neq)

    # TODO(synk): training-mode branch (data.x / edge_index swap) and dropout>0
    # are not exercised; eval-mode semantics reproduced here.
    return logits_pad[:, :num_classes], cl_loss[0, 0], y


# ----------------------------------------------------------------------------
# one-time host-side packing / preprocessing helpers
# ----------------------------------------------------------------------------
def pack_params(params):
    """Pack tiny parameter tensors into three lane-dense slabs (done once)."""
    hp = params["hard_fc1"]
    # requires hid_feats == out_feats (true for this module's test config)
    wpack = jnp.concatenate(
        [params["conv1_w"], params["conv2_w"], hp["w1"], hp["w2"]], axis=0)
    vpack = jnp.concatenate(
        [params["conv1_b"], params["conv2_b"], hp["b1"], hp["b2"],
         hp["gamma"], hp["beta"]], axis=0)
    ncls = params["fc_w"].shape[1]
    fc_w_pad = jnp.pad(params["fc_w"], ((0, 0), (0, 128 - ncls)))
    fc_b_pad = jnp.pad(params["fc_b"], ((0, 0), (0, 128 - ncls)),
                       constant_values=-1e30)   # padded classes never win softmax
    fcpack = jnp.concatenate([fc_w_pad, fc_b_pad], axis=0)
    return wpack, vpack, fcpack


def normalized_adjacency(adj):
    n = adj.shape[0]
    a_hat = adj + jnp.eye(n, dtype=jnp.float32)
    deg = jnp.sum(a_hat, axis=1)
    d_inv_sqrt = 1.0 / jnp.sqrt(deg)
    return a_hat * d_inv_sqrt[:, None] * d_inv_sqrt[None, :]


# ----------------------------------------------------------------------------
# deterministic setup + run
# ----------------------------------------------------------------------------
if __name__ == "__main__":
    key = jax.random.PRNGKey(0)
    N, G = 32, 8                      # 32 nodes, 8 graphs (4 nodes each)
    in_feats, hid_feats, out_feats = 16, 32, 32

    ks = jax.random.split(key, 8)

    x0 = jax.random.normal(ks[0], (N, in_feats), dtype=jnp.float32)

    adj1 = (jax.random.uniform(ks[1], (N, N)) < 0.2).astype(jnp.float32)
    adj2 = (jax.random.uniform(ks[2], (N, N)) < 0.2).astype(jnp.float32)
    a1 = normalized_adjacency(adj1)
    a2 = normalized_adjacency(adj2)

    # branch-stacked adjacency: [A1; A2] for the shared first layer, and
    # blockdiag(A1, A2) for the second layer
    Z = jnp.zeros((N, N), jnp.float32)
    a_tall = jnp.concatenate([a1, a2], axis=0)                          # (2N, N)
    a_blk = jnp.concatenate(
        [jnp.concatenate([a1, Z], axis=1),
         jnp.concatenate([Z, a2], axis=1)], axis=0)                     # (2N, 2N)

    # batch[n] = n // 4 ; block-diagonal scatter_mean pooling for both branches
    batch = jnp.arange(N) // (N // G)
    pool = (batch[None, :] == jnp.arange(G)[:, None]).astype(jnp.float32)
    pool = pool / jnp.sum(pool, axis=1, keepdims=True)                  # (G, N)
    Zp = jnp.zeros((G, N), jnp.float32)
    pool_blk = jnp.concatenate(
        [jnp.concatenate([pool, Zp], axis=1),
         jnp.concatenate([Zp, pool], axis=1)], axis=0)                  # (2G, 2N)

    # labels (y2 = y1, as augmented pairs) -> guarantees pos/neg pairs exist
    y1 = jnp.array([0, 1, 2, 3, 0, 1, 2, 3], dtype=jnp.int32)
    y2 = y1

    def lin(k, fan_in, fan_out):
        return 0.1 * jax.random.normal(k, (fan_in, fan_out), dtype=jnp.float32)

    params = {
        "conv1_w": lin(ks[3], in_feats, hid_feats),
        "conv1_b": jnp.zeros((1, hid_feats), jnp.float32),
        "conv2_w": lin(ks[4], hid_feats, out_feats),
        "conv2_b": jnp.zeros((1, out_feats), jnp.float32),
        "hard_fc1": {
            "w1": lin(ks[5], out_feats, out_feats),
            "b1": jnp.zeros((1, out_feats), jnp.float32),
            "w2": lin(ks[6], out_feats, out_feats),
            "b2": jnp.zeros((1, out_feats), jnp.float32),
            "gamma": jnp.ones((1, out_feats), jnp.float32),
            "beta": jnp.zeros((1, out_feats), jnp.float32),
        },
        # hard_fc2 exists in the torch module but is never used in forward()
        "fc_w": lin(ks[7], 2 * out_feats, 4),
        "fc_b": jnp.zeros((1, 4), jnp.float32),
    }
    wpack, vpack, fcpack = pack_params(params)    # one-time packing (outside jit)

    fwd = jax.jit(gcn_net_forward)
    logits, cl_loss, y = fwd(wpack, vpack, fcpack, x0, a_tall, a_blk, pool_blk, y1, y2)
    jax.block_until_ready((logits, cl_loss, y))

    assert logits.shape == (2 * G, 4)
    assert y.shape == (2 * G,)
    assert bool(jnp.isfinite(cl_loss))
    assert bool(jnp.all(jnp.isfinite(logits)))
    print("KERNEL_OK")
</pallas_src>

<mosaic_0001>
module attributes {stable_mosaic.version = 11 : i64} {
  func.func @gcn_net_kernel(%arg0: memref<32x16xf32, #tpu.memory_space<vmem>>, %arg1: memref<64x32xf32, #tpu.memory_space<vmem>>, %arg2: memref<64x64xf32, #tpu.memory_space<vmem>>, %arg3: memref<16x64xf32, #tpu.memory_space<vmem>>, %arg4: memref<112x32xf32, #tpu.memory_space<vmem>>, %arg5: memref<6x32xf32, #tpu.memory_space<vmem>>, %arg6: memref<65x128xf32, #tpu.memory_space<vmem>>, %arg7: memref<16x16xf32, #tpu.memory_space<vmem>>, %arg8: memref<16x128xf32, #tpu.memory_space<vmem>>, %arg9: memref<1x1xf32, #tpu.memory_space<vmem>>) attributes {dimension_semantics = [], scalar_prefetch = 0 : i64, scratch_operands = 0 : i64, tpu.core_type = #tpu.core_type<tc>} {
    %c0 = arith.constant 0 : index
    %c0_0 = arith.constant 0 : index
    %0 = vector.load %arg4[%c0, %c0_0] : memref<112x32xf32, #tpu.memory_space<vmem>>, vector<16x32xf32>
    %c16 = arith.constant 16 : index
    %c0_1 = arith.constant 0 : index
    %1 = vector.load %arg4[%c16, %c0_1] : memref<112x32xf32, #tpu.memory_space<vmem>>, vector<32x32xf32>
    %c48 = arith.constant 48 : index
    %c0_2 = arith.constant 0 : index
    %2 = vector.load %arg4[%c48, %c0_2] : memref<112x32xf32, #tpu.memory_space<vmem>>, vector<32x32xf32>
    %c80 = arith.constant 80 : index
    %c0_3 = arith.constant 0 : index
    %3 = vector.load %arg4[%c80, %c0_3] : memref<112x32xf32, #tpu.memory_space<vmem>>, vector<32x32xf32>
    %c0_4 = arith.constant 0 : index
    %c0_5 = arith.constant 0 : index
    %4 = vector.load %arg5[%c0_4, %c0_5] : memref<6x32xf32, #tpu.memory_space<vmem>>, vector<1x32xf32>
    %c1 = arith.constant 1 : index
    %c0_6 = arith.constant 0 : index
    %5 = vector.load %arg5[%c1, %c0_6] : memref<6x32xf32, #tpu.memory_space<vmem>>, vector<1x32xf32>
    %c2 = arith.constant 2 : index
    %c0_7 = arith.constant 0 : index
    %6 = vector.load %arg5[%c2, %c0_7] : memref<6x32xf32, #tpu.memory_space<vmem>>, vector<1x32xf32>
    %c3 = arith.constant 3 : index
    %c0_8 = arith.constant 0 : index
    %7 = vector.load %arg5[%c3, %c0_8] : memref<6x32xf32, #tpu.memory_space<vmem>>, vector<1x32xf32>
    %c4 = arith.constant 4 : index
    %c0_9 = arith.constant 0 : index
    %8 = vector.load %arg5[%c4, %c0_9] : memref<6x32xf32, #tpu.memory_space<vmem>>, vector<1x32xf32>
    %c5 = arith.constant 5 : index
    %c0_10 = arith.constant 0 : index
    %9 = vector.load %arg5[%c5, %c0_10] : memref<6x32xf32, #tpu.memory_space<vmem>>, vector<1x32xf32>
    %c0_11 = arith.constant 0 : index
    %c0_12 = arith.constant 0 : index
    %10 = vector.load %arg6[%c0_11, %c0_12] : memref<65x128xf32, #tpu.memory_space<vmem>>, vector<32x128xf32>
    %c32 = arith.constant 32 : index
    %c0_13 = arith.constant 0 : index
    %11 = vector.load %arg6[%c32, %c0_13] : memref<65x128xf32, #tpu.memory_space<vmem>>, vector<32x128xf32>
    %c64 = arith.constant 64 : index
    %c0_14 = arith.constant 0 : index
    %12 = vector.load %arg6[%c64, %c0_14] : memref<65x128xf32, #tpu.memory_space<vmem>>, vector<1x128xf32>
    %c0_15 = arith.constant 0 : index
    %c0_16 = arith.constant 0 : index
    %13 = vector.load %arg0[%c0_15, %c0_16] : memref<32x16xf32, #tpu.memory_space<vmem>>, vector<32x16xf32>
    %cst = arith.constant dense<0.000000e+00> : vector<32x32xf32>
    %14 = tpu.matmul %13, %0, %cst {dimension_numbers = #tpu.dot_dimension_numbers<[1], [0], [0], [1], [0, 0, 1, 1], [], []>} : vector<32x16xf32>, vector<16x32xf32>, vector<32x32xf32> -> vector<32x32xf32>
    %c0_17 = arith.constant 0 : index
    %c0_18 = arith.constant 0 : index
    %15 = vector.load %arg1[%c0_17, %c0_18] : memref<64x32xf32, #tpu.memory_space<vmem>>, vector<64x32xf32>
    %cst_19 = arith.constant dense<0.000000e+00> : vector<64x32xf32>
    %16 = tpu.matmul %15, %14, %cst_19 {dimension_numbers = #tpu.dot_dimension_numbers<[1], [0], [0], [1], [0, 0, 1, 1], [], []>} : vector<64x32xf32>, vector<32x32xf32>, vector<64x32xf32> -> vector<64x32xf32>
    %17 = vector.broadcast %4 : vector<1x32xf32> to vector<64x32xf32>
    %18 = arith.addf %16, %17 : vector<64x32xf32>
    %cst_20 = arith.constant 0.000000e+00 : f32
    %19 = vector.broadcast %cst_20 : f32 to vector<64x32xf32>
    %20 = arith.maximumf %18, %19 : vector<64x32xf32>
    %cst_21 = arith.constant dense<0.000000e+00> : vector<64x32xf32>
    %21 = tpu.matmul %20, %1, %cst_21 {dimension_numbers = #tpu.dot_dimension_numbers<[1], [0], [0], [1], [0, 0, 1, 1], [], []>} : vector<64x32xf32>, vector<32x32xf32>, vector<64x32xf32> -> vector<64x32xf32>
    %c0_22 = arith.constant 0 : index
    %c0_23 = arith.constant 0 : index
    %22 = vector.load %arg2[%c0_22, %c0_23] : memref<64x64xf32, #tpu.memory_space<vmem>>, vector<64x64xf32>
    %cst_24 = arith.constant dense<0.000000e+00> : vector<64x32xf32>
    %23 = tpu.matmul %22, %21, %cst_24 {dimension_numbers = #tpu.dot_dimension_numbers<[1], [0], [0], [1], [0, 0, 1, 1], [], []>} : vector<64x64xf32>, vector<64x32xf32>, vector<64x32xf32> -> vector<64x32xf32>
    %24 = vector.broadcast %5 : vector<1x32xf32> to vector<64x32xf32>
    %25 = arith.addf %23, %24 : vector<64x32xf32>
    %cst_25 = arith.constant 0.000000e+00 : f32
    %26 = vector.broadcast %cst_25 : f32 to vector<64x32xf32>
    %27 = arith.maximumf %25, %26 : vector<64x32xf32>
    %c0_26 = arith.constant 0 : index
    %c0_27 = arith.constant 0 : index
    %28 = vector.load %arg3[%c0_26, %c0_27] : memref<16x64xf32, #tpu.memory_space<vmem>>, vector<16x64xf32>
    %cst_28 = arith.constant dense<0.000000e+00> : vector<16x32xf32>
    %29 = tpu.matmul %28, %27, %cst_28 {dimension_numbers = #tpu.dot_dimension_numbers<[1], [0], [0], [1], [0, 0, 1, 1], [], []>} : vector<16x64xf32>, vector<64x32xf32>, vector<16x32xf32> -> vector<16x32xf32>
    %cst_29 = arith.constant dense<0.000000e+00> : vector<16x32xf32>
    %30 = tpu.matmul %29, %2, %cst_29 {dimension_numbers = #tpu.dot_dimension_numbers<[1], [0], [0], [1], [0, 0, 1, 1], [], []>} : vector<16x32xf32>, vector<32x32xf32>, vector<16x32xf32> -> vector<16x32xf32>
    %31 = vector.broadcast %6 : vector<1x32xf32> to vector<16x32xf32>
    %32 = arith.addf %30, %31 : vector<16x32xf32>
    %cst_30 = arith.constant 0.000000e+00 : f32
    %33 = vector.broadcast %cst_30 : f32 to vector<16x32xf32>
    %34 = arith.maximumf %32, %33 : vector<16x32xf32>
    %cst_31 = arith.constant dense<0.000000e+00> : vector<16x32xf32>
    %35 = tpu.matmul %34, %3, %cst_31 {dimension_numbers = #tpu.dot_dimension_numbers<[1], [0], [0], [1], [0, 0, 1, 1], [], []>} : vector<16x32xf32>, vector<32x32xf32>, vector<16x32xf32> -> vector<16x32xf32>
    %36 = vector.broadcast %7 : vector<1x32xf32> to vector<16x32xf32>
    %37 = arith.addf %35, %36 : vector<16x32xf32>
    %38 = arith.addf %37, %29 : vector<16x32xf32>
    %cst_32 = arith.constant dense<0.000000e+00> : vector<16xf32>
    %39 = vector.multi_reduction <add>, %38, %cst_32 [1] : vector<16x32xf32> to vector<16xf32>
    %40 = vector.shape_cast %39 : vector<16xf32> to vector<16x1xf32>
    %cst_33 = arith.constant 3.200000e+01 : f32
    %41 = vector.broadcast %cst_33 : f32 to vector<16x1xf32>
    %42 = arith.divf %40, %41 : vector<16x1xf32>
    %43 = vector.broadcast %42 : vector<16x1xf32> to vector<16x32xf32>
    %44 = arith.subf %38, %43 : vector<16x32xf32>
    %45 = arith.mulf %44, %44 : vector<16x32xf32>
    %cst_34 = arith.constant dense<0.000000e+00> : vector<16xf32>
    %46 = vector.multi_reduction <add>, %45, %cst_34 [1] : vector<16x32xf32> to vector<16xf32>
    %47 = vector.shape_cast %46 : vector<16xf32> to vector<16x1xf32>
    %cst_35 = arith.constant 3.200000e+01 : f32
    %48 = vector.broadcast %cst_35 : f32 to vector<16x1xf32>
    %49 = arith.divf %47, %48 : vector<16x1xf32>
    %50 = vector.broadcast %42 : vector<16x1xf32> to vector<16x32xf32>
    %51 = arith.subf %38, %50 : vector<16x32xf32>
    %cst_36 = arith.constant 9.99999997E-7 : f32
    %52 = vector.broadcast %cst_36 : f32 to vector<16x1xf32>
    %53 = arith.addf %49, %52 : vector<16x1xf32>
    %54 = math.rsqrt %53 : vector<16x1xf32>
    %55 = vector.broadcast %54 : vector<16x1xf32> to vector<16x32xf32>
    %56 = arith.mulf %51, %55 : vector<16x32xf32>
    %57 = vector.broadcast %8 : vector<1x32xf32> to vector<16x32xf32>
    %58 = arith.mulf %56, %57 : vector<16x32xf32>
    %59 = vector.broadcast %9 : vector<1x32xf32> to vector<16x32xf32>
    %60 = arith.addf %58, %59 : vector<16x32xf32>
    %61 = arith.mulf %29, %29 : vector<16x32xf32>
    %cst_37 = arith.constant dense<0.000000e+00> : vector<16xf32>
    %62 = vector.multi_reduction <add>, %61, %cst_37 [1] : vector<16x32xf32> to vector<16xf32>
    %63 = vector.shape_cast %62 : vector<16xf32> to vector<16x1xf32>
    %64 = arith.mulf %60, %60 : vector<16x32xf32>
    %cst_38 = arith.constant dense<0.000000e+00> : vector<16xf32>
    %65 = vector.multi_reduction <add>, %64, %cst_38 [1] : vector<16x32xf32> to vector<16xf32>
    %66 = vector.shape_cast %65 : vector<16xf32> to vector<16x1xf32>
    %67 = arith.addf %63, %66 : vector<16x1xf32>
    %cst_39 = arith.constant 9.99999996E-13 : f32
    %68 = vector.broadcast %cst_39 : f32 to vector<16x1xf32>
    %69 = arith.addf %67, %68 : vector<16x1xf32>
    %70 = math.rsqrt %69 : vector<16x1xf32>
    %cst_40 = arith.constant 3.33333325 : f32
    %71 = vector.broadcast %cst_40 : f32 to vector<16x1xf32>
    %72 = arith.mulf %70, %71 : vector<16x1xf32>
    %73 = vector.broadcast %72 : vector<16x1xf32> to vector<16x32xf32>
    %74 = arith.mulf %29, %73 : vector<16x32xf32>
    %75 = vector.broadcast %70 : vector<16x1xf32> to vector<16x32xf32>
    %76 = arith.mulf %29, %75 : vector<16x32xf32>
    %cst_41 = arith.constant dense<0.000000e+00> : vector<16x16xf32>
    %77 = tpu.matmul %74, %76, %cst_41 {dimension_numbers = #tpu.dot_dimension_numbers<[1], [1], [0], [0], [0, 0, 1, 0], [], []>} : vector<16x32xf32>, vector<16x32xf32>, vector<16x16xf32> -> vector<16x16xf32>
    %78 = vector.broadcast %72 : vector<16x1xf32> to vector<16x32xf32>
    %79 = arith.mulf %60, %78 : vector<16x32xf32>
    %80 = vector.broadcast %70 : vector<16x1xf32> to vector<16x32xf32>
    %81 = arith.mulf %60, %80 : vector<16x32xf32>
    %cst_42 = arith.constant dense<0.000000e+00> : vector<16x16xf32>
    %82 = tpu.matmul %79, %81, %cst_42 {dimension_numbers = #tpu.dot_dimension_numbers<[1], [1], [0], [0], [0, 0, 1, 0], [], []>} : vector<16x32xf32>, vector<16x32xf32>, vector<16x16xf32> -> vector<16x16xf32>
    %83 = arith.addf %77, %82 : vector<16x16xf32>
    %84 = math.exp %83 : vector<16x16xf32>
    %85 = tpu.iota {dimensions = array<i32: 0>} : vector<16x16xi32>
    %86 = tpu.iota {dimensions = array<i32: 1>} : vector<16x16xi32>
    %87 = arith.cmpi eq, %85, %86 : vector<16x16xi32>
    %cst_43 = arith.constant 0.000000e+00 : f32
    %88 = vector.broadcast %cst_43 : f32 to vector<16x16xf32>
    %89 = arith.select %87, %88, %84 : vector<16x16xi1>, vector<16x16xf32>
    %c0_44 = arith.constant 0 : index
    %c0_45 = arith.constant 0 : index
    %90 = vector.load %arg7[%c0_44, %c0_45] : memref<16x16xf32, #tpu.memory_space<vmem>>, vector<16x16xf32>
    %91 = arith.mulf %89, %90 : vector<16x16xf32>
    %cst_46 = arith.constant dense<0.000000e+00> : vector<16xf32>
    %92 = vector.multi_reduction <add>, %91, %cst_46 [1] : vector<16x16xf32> to vector<16xf32>
    %93 = vector.shape_cast %92 : vector<16xf32> to vector<16x1xf32>
    %cst_47 = arith.constant 1.000000e+00 : f32
    %94 = vector.broadcast %cst_47 : f32 to vector<16x16xf32>
    %95 = arith.subf %94, %90 : vector<16x16xf32>
    %96 = arith.mulf %89, %95 : vector<16x16xf32>
    %cst_48 = arith.constant dense<0.000000e+00> : vector<16xf32>
    %97 = vector.multi_reduction <add>, %96, %cst_48 [1] : vector<16x16xf32> to vector<16xf32>
    %98 = vector.shape_cast %97 : vector<16xf32> to vector<16x1xf32>
    %99 = vector.extract_strided_slice %93 {offsets = [0, 0], sizes = [8, 1], strides = [1, 1]} : vector<16x1xf32> to vector<8x1xf32>
    %100 = math.log %99 : vector<8x1xf32>
    %101 = vector.extract_strided_slice %98 {offsets = [0, 0], sizes = [8, 1], strides = [1, 1]} : vector<16x1xf32> to vector<8x1xf32>
    %102 = math.log %101 : vector<8x1xf32>
    %103 = arith.subf %100, %102 : vector<8x1xf32>
    %104 = vector.shape_cast %103 : vector<8x1xf32> to vector<1x8x1xf32>
    %cst_49 = arith.constant dense<0.000000e+00> : vector<1xf32>
    %105 = vector.multi_reduction <add>, %104, %cst_49 [1, 2] : vector<1x8x1xf32> to vector<1xf32>
    %106 = vector.shape_cast %105 : vector<1xf32> to vector<1x1x1xf32>
    %107 = vector.extract %106[0, 0, 0] : f32 from vector<1x1x1xf32>
    %108 = vector.broadcast %107 : f32 to vector<1x1xf32>
    %cst_50 = arith.constant 38.8162422 : f32
    %109 = vector.broadcast %cst_50 : f32 to vector<1x1xf32>
    %110 = arith.addf %108, %109 : vector<1x1xf32>
    %c0_51 = arith.constant 0 : index
    %c0_52 = arith.constant 0 : index
    %111 = vector.load %arg9[%c0_51, %c0_52] : memref<1x1xf32, #tpu.memory_space<vmem>>, vector<1x1xf32>
    tpu.vector_store %arg9[%c0_51, %c0_52], %110 {strides = array<i32>} : memref<1x1xf32, #tpu.memory_space<vmem>>, vector<1x1xf32>,
    %cst_53 = arith.constant dense<0.000000e+00> : vector<16x128xf32>
    %112 = tpu.matmul %29, %10, %cst_53 {dimension_numbers = #tpu.dot_dimension_numbers<[1], [0], [0], [1], [0, 0, 1, 1], [], []>} : vector<16x32xf32>, vector<32x128xf32>, vector<16x128xf32> -> vector<16x128xf32>
    %cst_54 = arith.constant dense<0.000000e+00> : vector<16x128xf32>
    %113 = tpu.matmul %60, %11, %cst_54 {dimension_numbers = #tpu.dot_dimension_numbers<[1], [0], [0], [1], [0, 0, 1, 1], [], []>} : vector<16x32xf32>, vector<32x128xf32>, vector<16x128xf32> -> vector<16x128xf32>
    %114 = arith.addf %112, %113 : vector<16x128xf32>
    %115 = vector.broadcast %12 : vector<1x128xf32> to vector<16x128xf32>
    %116 = arith.addf %114, %115 : vector<16x128xf32>
    %cst_55 = arith.constant dense<0xFF800000> : vector<16xf32>
    %117 = vector.multi_reduction <maximumf>, %116, %cst_55 [1] : vector<16x128xf32> to vector<16xf32>
    %118 = vector.shape_cast %117 : vector<16xf32> to vector<16x1xf32>
    %119 = vector.broadcast %118 : vector<16x1xf32> to vector<16x128xf32>
    %120 = arith.subf %116, %119 : vector<16x128xf32>
    %121 = math.exp %120 : vector<16x128xf32>
    %cst_56 = arith.constant dense<0.000000e+00> : vector<16xf32>
    %122 = vector.multi_reduction <add>, %121, %cst_56 [1] : vector<16x128xf32> to vector<16xf32>
    %123 = vector.shape_cast %122 : vector<16xf32> to vector<16x1xf32>
    %124 = math.log %123 : vector<16x1xf32>
    %125 = arith.addf %124, %118 : vector<16x1xf32>
    %126 = vector.broadcast %125 : vector<16x1xf32> to vector<16x128xf32>
    %127 = arith.subf %116, %126 : vector<16x128xf32>
    %c0_57 = arith.constant 0 : index
    %c0_58 = arith.constant 0 : index
    %128 = vector.load %arg8[%c0_57, %c0_58] : memref<16x128xf32, #tpu.memory_space<vmem>>, vector<16x128xf32>
    tpu.vector_store %arg8[%c0_57, %c0_58], %127 {strides = array<i32>} : memref<16x128xf32, #tpu.memory_space<vmem>>, vector<16x128xf32>,
    return
  }
}

</mosaic_0001>

<llo_original>
// kernel: gcn_net_forward.1
$region0: #{gcn_net_forward.1}
  #allocation0 [shape = 'u32[]', space=smem, size = 0x4, offset = 0x4, fixed_abs, tag = 'smem constant byte address 0x4 - core index']
  #allocation1 [shape = 'u32[144,128]{1,0:T(1,128)}', space=vmem, size = 0x12000, scoped, tag = 'internal scratch']
  %s0 = inlined_call_operand.vmem [shape: f32[32,16], index: 0, kind: input, shape index: {}]
  %s1 = inlined_call_operand.vmem [shape: f32[64,32], index: 1, kind: input, shape index: {}]
  %s2 = inlined_call_operand.vmem [shape: f32[64,64], index: 2, kind: input, shape index: {}]
  %s3 = inlined_call_operand.vmem [shape: f32[16,64], index: 3, kind: input, shape index: {}]
  %s4 = inlined_call_operand.vmem [shape: f32[112,32], index: 4, kind: input, shape index: {}]
  %s5 = inlined_call_operand.vmem [shape: f32[6,32], index: 5, kind: input, shape index: {}]
  %s6 = inlined_call_operand.vmem [shape: f32[65,128], index: 6, kind: input, shape index: {}]
  %s7 = inlined_call_operand.vmem [shape: f32[16,16], index: 7, kind: input, shape index: {}]
  %s8 = inlined_call_operand.vmem [shape: f32[16,128], index: 8, kind: output, shape index: {0}]
  %s9 = inlined_call_operand.hbm [shape: f32[1,1], index: 9, kind: output, shape index: {1}]
  %10 = xla_tuple %s8, %s9
  %s11 = sld [smem:[#allocation0]]
  $region50: #{gcn_net_forward.1} parent=0
    _
  %s13 = ssub.s32 1, %s11
  %s14 = scalar_select 0, %s13, %s11
  $region1: #{gcn_net_forward.1} parent=0
    #allocation2 [shape = 'u8[512]{0}', space=vmem, size = 0x400, scoped, tag = 'output window, operand 1, single buffered']
    #allocation3 [shape = 's32[1]{0}', space=sflag, size = 0x4, scoped, tag = 'scoped memory for gcn_net_forward.1']
    %15 = vsyncpa [#allocation3], 0
    // Predicated region
    $region2: #{gcn_net_forward.1} parent=1 // pred_check
      _
    $region3: #{gcn_net_forward.1} parent=1 // pred_check_branch
      %17 = sbr.rel (0) target = $region5
    $region4: #{gcn_net_forward.1} parent=1 // pred_region
      _
    $region5: #{gcn_net_forward.1} parent=1 // pred_fallthru
      _
    // Predicated region
    $region6: #{gcn_net_forward.1} parent=1 // pred_check
      _
    $region7: #{gcn_net_forward.1} parent=1 // pred_check_branch
      %19 = sbr.rel (0) target = $region9
    $region8: #{gcn_net_forward.1} parent=1 // pred_region
      _
    $region9: #{gcn_net_forward.1} parent=1 // pred_fallthru
      _
    // Predicated region
    $region10: #{gcn_net_forward.1} parent=1 // pred_check
      _
    $region11: #{gcn_net_forward.1} parent=1 // pred_check_branch
      %21 = sbr.rel (0) target = $region13
    $region12: #{gcn_net_forward.1} parent=1 // pred_region
      _
    $region13: #{gcn_net_forward.1} parent=1 // pred_fallthru
      _
    // Predicated region
    $region14: #{gcn_net_forward.1} parent=1 // pred_check
      _
    $region15: #{gcn_net_forward.1} parent=1 // pred_check_branch
      %23 = sbr.rel (0) target = $region17
    $region16: #{gcn_net_forward.1} parent=1 // pred_region
      _
    $region17: #{gcn_net_forward.1} parent=1 // pred_fallthru
      _
    // Predicated region
    $region18: #{gcn_net_forward.1} parent=1 // pred_check
      _
    $region19: #{gcn_net_forward.1} parent=1 // pred_check_branch
      %25 = sbr.rel (0) target = $region21
    $region20: #{gcn_net_forward.1} parent=1 // pred_region
      _
    $region21: #{gcn_net_forward.1} parent=1 // pred_fallthru
      _
    // Predicated region
    $region22: #{gcn_net_forward.1} parent=1 // pred_check
      _
    $region23: #{gcn_net_forward.1} parent=1 // pred_check_branch
      %27 = sbr.rel (0) target = $region25
    $region24: #{gcn_net_forward.1} parent=1 // pred_region
      _
    $region25: #{gcn_net_forward.1} parent=1 // pred_fallthru
      _
    // Predicated region
    $region26: #{gcn_net_forward.1} parent=1 // pred_check
      _
    $region27: #{gcn_net_forward.1} parent=1 // pred_check_branch
      %29 = sbr.rel (0) target = $region29
    $region28: #{gcn_net_forward.1} parent=1 // pred_region
      _
    $region29: #{gcn_net_forward.1} parent=1 // pred_fallthru
      _
    // Predicated region
    $region30: #{gcn_net_forward.1} parent=1 // pred_check
      _
    $region31: #{gcn_net_forward.1} parent=1 // pred_check_branch
      %31 = sbr.rel (0) target = $region33
    $region32: #{gcn_net_forward.1} parent=1 // pred_region
      _
    $region33: #{gcn_net_forward.1} parent=1 // pred_fallthru
      _
    %v32 = vld [vmem:[%s4] sm:$0xff]
    %v33 = vld [vmem:[%s4 + $0x8] sm:$0xff]
    %v34 = vld [vmem:[%s4 + $0x10] sm:$0xff]
    %v35 = vld [vmem:[%s4 + $0x18] sm:$0xff]
    %v36 = vld [vmem:[%s4 + $0x20] sm:$0xff]
    %v37 = vld [vmem:[%s4 + $0x28] sm:$0xff]
    %v38 = vld [vmem:[%s4 + $0x30] sm:$0xff]
    %v39 = vld [vmem:[%s4 + $0x38] sm:$0xff]
    %v40 = vld [vmem:[%s4 + $0x40] sm:$0xff]
    %v41 = vld [vmem:[%s4 + $0x48] sm:$0xff]
    %v42 = vld [vmem:[%s4 + $0x50] sm:$0xff]
    %v43 = vld [vmem:[%s4 + $0x58] sm:$0xff]
    %v44 = vld [vmem:[%s4 + $0x60] sm:$0xff]
    %v45 = vld [vmem:[%s4 + $0x68] sm:$0xff]
    %v46 = vld [vmem:[%s5] sm:$0x1]
    %v47 = vld [vmem:[%s5 + $0x1] sm:$0x1]
    %v48 = vld [vmem:[%s5 + $0x2] sm:$0x1]
    %v49 = vld [vmem:[%s5 + $0x3] sm:$0x1]
    %v50 = vld [vmem:[%s5 + $0x4] sm:$0x1]
    %v51 = vld [vmem:[%s5 + $0x5] sm:$0x1]
    %v52 = vld [vmem:[%s6] sm:$0xff]
    %v53 = vld [vmem:[%s6 + $0x8] sm:$0xff]
    %v54 = vld [vmem:[%s6 + $0x10] sm:$0xff]
    %v55 = vld [vmem:[%s6 + $0x18] sm:$0xff]
    %v56 = vld [vmem:[%s6 + $0x20] sm:$0xff]
    %v57 = vld [vmem:[%s6 + $0x28] sm:$0xff]
    %v58 = vld [vmem:[%s6 + $0x30] sm:$0xff]
    %v59 = vld [vmem:[%s6 + $0x38] sm:$0xff]
    %v60 = vld [vmem:[%s6 + $0x40] sm:$0x1]
    %v61 = vld [vmem:[%s0] sm:$0xff]
    %v62 = vld [vmem:[%s0 + $0x8] sm:$0xff]
    %v63 = vld [vmem:[%s0 + $0x10] sm:$0xff]
    %v64 = vld [vmem:[%s0 + $0x18] sm:$0xff]
    %vm65 = vcmask 130048
    %v67 = vsel %vm65, %v61, 0
    %v70 = vsel %vm65, %v62, 0
    %v73 = vsel %vm65, %v63, 0
    %v76 = vsel %vm65, %v64, 0
    %78 = vmatprep.subr.mxu0 0.0
    %79 = vmatpush1.msra.mxu0 %v32
    %80 = vmatprep.subr.mxu0 0.0
    %81 = vmatpush1.msra.mxu0 %v33
    %82 = vmatprep.subr.mxu0 0.0
    %83 = vmatpush1.msra.mxu0 0.0
    %84 = vmatprep.subr.mxu0 0.0
    %85 = vmatpush1.msra.mxu0 0.0
    %86 = vmatprep.subr.mxu0 0.0
    %87 = vmatpush1.msra.mxu0 0.0
    %88 = vmatprep.subr.mxu0 0.0
    %89 = vmatpush1.msra.mxu0 0.0
    %90 = vmatprep.subr.mxu0 0.0
    %91 = vmatpush1.msra.mxu0 0.0
    %92 = vmatprep.subr.mxu0 0.0
    %93 = vmatpush1.msra.mxu0 0.0
    %94 = vmatprep.subr.mxu0 0.0
    %95 = vmatpush1.msra.mxu0 0.0
    %96 = vmatprep.subr.mxu0 0.0
    %97 = vmatpush1.msra.mxu0 0.0
    %98 = vmatprep.subr.mxu0 0.0
    %99 = vmatpush1.msra.mxu0 0.0
    %100 = vmatprep.subr.mxu0 0.0
    %101 = vmatpush1.msra.mxu0 0.0
    %102 = vmatprep.subr.mxu0 0.0
    %103 = vmatpush1.msra.mxu0 0.0
    %104 = vmatprep.subr.mxu0 0.0
    %105 = vmatpush1.msra.mxu0 0.0
    %106 = vmatprep.subr.mxu0 0.0
    %107 = vmatpush1.msra.mxu0 0.0
    %108 = vmatprep.subr.mxu0 0.0
    %109 = vmatpush1.msra.mxu0 0.0
    %110 = vmatprep.subr.mxu0 0.0
    %111 = vmatpush1.msra.mxu0 0.0
    %112 = vmatprep.subr.mxu0 0.0
    %113 = vmatpush1.msra.mxu0 0.0
    %114 = vmatprep.subr.mxu0 0.0
    %115 = vmatpush1.msra.mxu0 0.0
    %116 = vmatprep.subr.mxu0 0.0
    %117 = vmatpush1.msra.mxu0 0.0
    %118 = vmatprep.subr.mxu0 0.0
    %119 = vmatpush1.msra.mxu0 0.0
    %120 = vmatprep.subr.mxu0 0.0
    %121 = vmatpush1.msra.mxu0 0.0
    %122 = vmatprep.subr.mxu0 0.0
    %123 = vmatpush1.msra.mxu0 0.0
    %124 = vmatprep.subr.mxu0 0.0
    %125 = vmatpush1.msra.mxu0 0.0
    %126 = vmatprep.subr.mxu0 0.0
    %127 = vmatpush1.msra.mxu0 0.0
    %128 = vmatprep.subr.mxu0 0.0
    %129 = vmatpush1.msra.mxu0 0.0
    %130 = vmatprep.subr.mxu0 0.0
    %131 = vmatpush1.msra.mxu0 0.0
    %132 = vmatprep.subr.mxu0 0.0
    %133 = vmatpush1.msra.mxu0 0.0
    %134 = vmatprep.subr.mxu0 0.0
    %135 = vmatpush1.msra.mxu0 0.0
    %136 = vmatprep.subr.mxu0 0.0
    %137 = vmatpush1.msra.mxu0 0.0
    %138 = vmatprep.subr.mxu0 0.0
    %139 = vmatpush1.msra.mxu0 0.0
    %140 = vmatprep.subr.mxu0 0.0
    %141 = vmatpush1.msra.mxu0 0.0
    %142 = vmatprep.mubr.f32.mxu0 0.0
    %143 = vmatmul.mubr.f32.gmra.mrb[0].mxu0 %v67
    %v144 = vpop.f32.mrb[0].mxu0
    %v145 = vadd.f32 0.0, %v144
    %v146 = vpop.f32.mrb[0].mxu0
    %147 = vmatprep.mubr.f32.mxu0 0.0
    %148 = vmatmul.mubr.f32.gmra.mrb[0].mxu0 %v70
    %v149 = vpop.f32.mrb[0].mxu0
    %v150 = vadd.f32 0.0, %v149
    %v151 = vpop.f32.mrb[0].mxu0
    %152 = vmatprep.mubr.f32.mxu0 0.0
    %153 = vmatmul.mubr.f32.gmra.mrb[0].mxu0 %v73
    %v154 = vpop.f32.mrb[0].mxu0
    %v155 = vadd.f32 0.0, %v154
    %v156 = vpop.f32.mrb[0].mxu0
    %157 = vmatprep.mubr.f32.mxu0 0.0
    %158 = vmatmul.mubr.f32.gmra.mrb[0].mxu0 %v76
    %v159 = vpop.f32.mrb[0].mxu0
    %v160 = vadd.f32 0.0, %v159
    %v161 = vpop.f32.mrb[0].mxu0
    %162 = vdwg.mxu0
    %v163 = vld [vmem:[%s1] sm:$0xff]
    %v164 = vld [vmem:[%s1 + $0x8] sm:$0xff]
    %v165 = vld [vmem:[%s1 + $0x10] sm:$0xff]
    %v166 = vld [vmem:[%s1 + $0x18] sm:$0xff]
    %v167 = vld [vmem:[%s1 + $0x20] sm:$0xff]
    %v168 = vld [vmem:[%s1 + $0x28] sm:$0xff]
    %v169 = vld [vmem:[%s1 + $0x30] sm:$0xff]
    %v170 = vld [vmem:[%s1 + $0x38] sm:$0xff]
    %v171 = vlaneseq
    %v172 = vshrl.u32 %v171, 7
    %v173 = vsub.s32 0, %v172
    %v174 = vrot.slane %v46, %v173
    %vm175 = vcmask 261120
    %v177 = vsel %vm175, %v163, 0
    %v180 = vsel %vm175, %v164, 0
    %v183 = vsel %vm175, %v165, 0
    %v186 = vsel %vm175, %v166, 0
    %v189 = vsel %vm175, %v167, 0
    %v192 = vsel %vm175, %v168, 0
    %v195 = vsel %vm175, %v169, 0
    %v198 = vsel %vm175, %v170, 0
    %200 = vmatprep.subr.mxu0 0.0
    %201 = vmatpush1.msra.mxu0 %v145
    %202 = vmatprep.subr.mxu0 0.0
    %203 = vmatpush1.msra.mxu0 %v150
    %204 = vmatprep.subr.mxu0 0.0
    %205 = vmatpush1.msra.mxu0 %v155
    %206 = vmatprep.subr.mxu0 0.0
    %207 = vmatpush1.msra.mxu0 %v160
    %208 = vmatprep.subr.mxu0 0.0
    %209 = vmatpush1.msra.mxu0 0.0
    %210 = vmatprep.subr.mxu0 0.0
    %211 = vmatpush1.msra.mxu0 0.0
    %212 = vmatprep.subr.mxu0 0.0
    %213 = vmatpush1.msra.mxu0 0.0
    %214 = vmatprep.subr.mxu0 0.0
    %215 = vmatpush1.msra.mxu0 0.0
    %216 = vmatprep.subr.mxu0 0.0
    %217 = vmatpush1.msra.mxu0 0.0
    %218 = vmatprep.subr.mxu0 0.0
    %219 = vmatpush1.msra.mxu0 0.0
    %220 = vmatprep.subr.mxu0 0.0
    %221 = vmatpush1.msra.mxu0 0.0
    %222 = vmatprep.subr.mxu0 0.0
    %223 = vmatpush1.msra.mxu0 0.0
    %224 = vmatprep.subr.mxu0 0.0
    %225 = vmatpush1.msra.mxu0 0.0
    %226 = vmatprep.subr.mxu0 0.0
    %227 = vmatpush1.msra.mxu0 0.0
    %228 = vmatprep.subr.mxu0 0.0
    %229 = vmatpush1.msra.mxu0 0.0
    %230 = vmatprep.subr.mxu0 0.0
    %231 = vmatpush1.msra.mxu0 0.0
    %232 = vmatprep.subr.mxu0 0.0
    %233 = vmatpush1.msra.mxu0 0.0
    %234 = vmatprep.subr.mxu0 0.0
    %235 = vmatpush1.msra.mxu0 0.0
    %236 = vmatprep.subr.mxu0 0.0
    %237 = vmatpush1.msra.mxu0 0.0
    %238 = vmatprep.subr.mxu0 0.0
    %239 = vmatpush1.msra.mxu0 0.0
    %240 = vmatprep.subr.mxu0 0.0
    %241 = vmatpush1.msra.mxu0 0.0
    %242 = vmatprep.subr.mxu0 0.0
    %243 = vmatpush1.msra.mxu0 0.0
    %244 = vmatprep.subr.mxu0 0.0
    %245 = vmatpush1.msra.mxu0 0.0
    %246 = vmatprep.subr.mxu0 0.0
    %247 = vmatpush1.msra.mxu0 0.0
    %248 = vmatprep.subr.mxu0 0.0
    %249 = vmatpush1.msra.mxu0 0.0
    %250 = vmatprep.subr.mxu0 0.0
    %251 = vmatpush1.msra.mxu0 0.0
    %252 = vmatprep.subr.mxu0 0.0
    %253 = vmatpush1.msra.mxu0 0.0
    %254 = vmatprep.subr.mxu0 0.0
    %255 = vmatpush1.msra.mxu0 0.0
    %256 = vmatprep.subr.mxu0 0.0
    %257 = vmatpush1.msra.mxu0 0.0
    %258 = vmatprep.subr.mxu0 0.0
    %259 = vmatpush1.msra.mxu0 0.0
    %260 = vmatprep.subr.mxu0 0.0
    %261 = vmatpush1.msra.mxu0 0.0
    %262 = vmatprep.subr.mxu0 0.0
    %263 = vmatpush1.msra.mxu0 0.0
    %264 = vmatprep.mubr.f32.mxu0 0.0
    %265 = vmatmul.mubr.f32.gmra.mrb[0].mxu0 %v177
    %v266 = vpop.f32.mrb[0].mxu0
    %v267 = vadd.f32 %v174, %v266
    %v268 = vpop.f32.mrb[0].mxu0
    %269 = vmatprep.mubr.f32.mxu0 0.0
    %270 = vmatmul.mubr.f32.gmra.mrb[0].mxu0 %v180
    %v271 = vpop.f32.mrb[0].mxu0
    %v272 = vadd.f32 %v174, %v271
    %v273 = vpop.f32.mrb[0].mxu0
    %274 = vmatprep.mubr.f32.mxu0 0.0
    %275 = vmatmul.mubr.f32.gmra.mrb[0].mxu0 %v183
    %v276 = vpop.f32.mrb[0].mxu0
    %v277 = vadd.f32 %v174, %v276
    %v278 = vpop.f32.mrb[0].mxu0
    %279 = vmatprep.mubr.f32.mxu0 0.0
    %280 = vmatmul.mubr.f32.gmra.mrb[0].mxu0 %v186
    %v281 = vpop.f32.mrb[0].mxu0
    %v282 = vadd.f32 %v174, %v281
    %v283 = vpop.f32.mrb[0].mxu0
    %284 = vmatprep.mubr.f32.mxu0 0.0
    %285 = vmatmul.mubr.f32.gmra.mrb[0].mxu0 %v189
    %v286 = vpop.f32.mrb[0].mxu0
    %v287 = vadd.f32 %v174, %v286
    %v288 = vpop.f32.mrb[0].mxu0
    %289 = vmatprep.mubr.f32.mxu0 0.0
    %290 = vmatmul.mubr.f32.gmra.mrb[0].mxu0 %v192
    %v291 = vpop.f32.mrb[0].mxu0
    %v292 = vadd.f32 %v174, %v291
    %v293 = vpop.f32.mrb[0].mxu0
    %294 = vmatprep.mubr.f32.mxu0 0.0
    %295 = vmatmul.mubr.f32.gmra.mrb[0].mxu0 %v195
    %v296 = vpop.f32.mrb[0].mxu0
    %v297 = vadd.f32 %v174, %v296
    %v298 = vpop.f32.mrb[0].mxu0
    %299 = vmatprep.mubr.f32.mxu0 0.0
    %300 = vmatmul.mubr.f32.gmra.mrb[0].mxu0 %v198
    %v301 = vpop.f32.mrb[0].mxu0
    %v302 = vadd.f32 %v174, %v301
    %v303 = vpop.f32.mrb[0].mxu0
    %304 = vdwg.mxu0
    %v305 = vmax.f32 %v267, 0.0
    %v306 = vmax.f32 %v272, 0.0
    %v307 = vmax.f32 %v277, 0.0
    %v308 = vmax.f32 %v282, 0.0
    %v309 = vmax.f32 %v287, 0.0
    %v310 = vmax.f32 %v292, 0.0
    %v311 = vmax.f32 %v297, 0.0
    %v312 = vmax.f32 %v302, 0.0
    %v314 = vsel %vm175, %v305, 0
    %v317 = vsel %vm175, %v306, 0
    %v320 = vsel %vm175, %v307, 0
    %v323 = vsel %vm175, %v308, 0
    %v326 = vsel %vm175, %v309, 0
    %v329 = vsel %vm175, %v310, 0
    %v332 = vsel %vm175, %v311, 0
    %v335 = vsel %vm175, %v312, 0
    %337 = vmatprep.subr.mxu0 0.0
    %338 = vmatpush1.msra.mxu0 %v34
    %339 = vmatprep.subr.mxu0 0.0
    %340 = vmatpush1.msra.mxu0 %v35
    %341 = vmatprep.subr.mxu0 0.0
    %342 = vmatpush1.msra.mxu0 %v36
    %343 = vmatprep.subr.mxu0 0.0
    %344 = vmatpush1.msra.mxu0 %v37
    %345 = vmatprep.subr.mxu0 0.0
    %346 = vmatpush1.msra.mxu0 0.0
    %347 = vmatprep.subr.mxu0 0.0
    %348 = vmatpush1.msra.mxu0 0.0
    %349 = vmatprep.subr.mxu0 0.0
    %350 = vmatpush1.msra.mxu0 0.0
    %351 = vmatprep.subr.mxu0 0.0
    %352 = vmatpush1.msra.mxu0 0.0
    %353 = vmatprep.subr.mxu0 0.0
    %354 = vmatpush1.msra.mxu0 0.0
    %355 = vmatprep.subr.mxu0 0.0
    %356 = vmatpush1.msra.mxu0 0.0
    %357 = vmatprep.subr.mxu0 0.0
    %358 = vmatpush1.msra.mxu0 0.0
    %359 = vmatprep.subr.mxu0 0.0
    %360 = vmatpush1.msra.mxu0 0.0
    %361 = vmatprep.subr.mxu0 0.0
    %362 = vmatpush1.msra.mxu0 0.0
    %363 = vmatprep.subr.mxu0 0.0
    %364 = vmatpush1.msra.mxu0 0.0
    %365 = vmatprep.subr.mxu0 0.0
    %366 = vmatpush1.msra.mxu0 0.0
    %367 = vmatprep.subr.mxu0 0.0
    %368 = vmatpush1.msra.mxu0 0.0
    %369 = vmatprep.subr.mxu0 0.0
    %370 = vmatpush1.msra.mxu0 0.0
    %371 = vmatprep.subr.mxu0 0.0
    %372 = vmatpush1.msra.mxu0 0.0
    %373 = vmatprep.subr.mxu0 0.0
    %374 = vmatpush1.msra.mxu0 0.0
    %375 = vmatprep.subr.mxu0 0.0
    %376 = vmatpush1.msra.mxu0 0.0
    %377 = vmatprep.subr.mxu0 0.0
    %378 = vmatpush1.msra.mxu0 0.0
    %379 = vmatprep.subr.mxu0 0.0
    %380 = vmatpush1.msra.mxu0 0.0
    %381 = vmatprep.subr.mxu0 0.0
    %382 = vmatpush1.msra.mxu0 0.0
    %383 = vmatprep.subr.mxu0 0.0
    %384 = vmatpush1.msra.mxu0 0.0
    %385 = vmatprep.subr.mxu0 0.0
    %386 = vmatpush1.msra.mxu0 0.0
    %387 = vmatprep.subr.mxu0 0.0
    %388 = vmatpush1.msra.mxu0 0.0
    %389 = vmatprep.subr.mxu0 0.0
    %390 = vmatpush1.msra.mxu0 0.0
    %391 = vmatprep.subr.mxu0 0.0
    %392 = vmatpush1.msra.mxu0 0.0
    %393 = vmatprep.subr.mxu0 0.0
    %394 = vmatpush1.msra.mxu0 0.0
    %395 = vmatprep.subr.mxu0 0.0
    %396 = vmatpush1.msra.mxu0 0.0
    %397 = vmatprep.subr.mxu0 0.0
    %398 = vmatpush1.msra.mxu0 0.0
    %399 = vmatprep.subr.mxu0 0.0
    %400 = vmatpush1.msra.mxu0 0.0
    %401 = vmatprep.mubr.f32.mxu0 0.0
    %402 = vmatmul.mubr.f32.gmra.mrb[0].mxu0 %v314
    %v403 = vpop.f32.mrb[0].mxu0
    %v404 = vadd.f32 0.0, %v403
    %v405 = vpop.f32.mrb[0].mxu0
    %406 = vmatprep.mubr.f32.mxu0 0.0
    %407 = vmatmul.mubr.f32.gmra.mrb[0].mxu0 %v317
    %v408 = vpop.f32.mrb[0].mxu0
    %v409 = vadd.f32 0.0, %v408
    %v410 = vpop.f32.mrb[0].mxu0
    %411 = vmatprep.mubr.f32.mxu0 0.0
    %412 = vmatmul.mubr.f32.gmra.mrb[0].mxu0 %v320
    %v413 = vpop.f32.mrb[0].mxu0
    %v414 = vadd.f32 0.0, %v413
    %v415 = vpop.f32.mrb[0].mxu0
    %416 = vmatprep.mubr.f32.mxu0 0.0
    %417 = vmatmul.mubr.f32.gmra.mrb[0].mxu0 %v323
    %v418 = vpop.f32.mrb[0].mxu0
    %v419 = vadd.f32 0.0, %v418
    %v420 = vpop.f32.mrb[0].mxu0
    %421 = vmatprep.mubr.f32.mxu0 0.0
    %422 = vmatmul.mubr.f32.gmra.mrb[0].mxu0 %v326
    %v423 = vpop.f32.mrb[0].mxu0
    %v424 = vadd.f32 0.0, %v423
    %v425 = vpop.f32.mrb[0].mxu0
    %426 = vmatprep.mubr.f32.mxu0 0.0
    %427 = vmatmul.mubr.f32.gmra.mrb[0].mxu0 %v329
    %v428 = vpop.f32.mrb[0].mxu0
    %v429 = vadd.f32 0.0, %v428
    %v430 = vpop.f32.mrb[0].mxu0
    %431 = vmatprep.mubr.f32.mxu0 0.0
    %432 = vmatmul.mubr.f32.gmra.mrb[0].mxu0 %v332
    %v433 = vpop.f32.mrb[0].mxu0
    %v434 = vadd.f32 0.0, %v433
    %v435 = vpop.f32.mrb[0].mxu0
    %436 = vmatprep.mubr.f32.mxu0 0.0
    %437 = vmatmul.mubr.f32.gmra.mrb[0].mxu0 %v335
    %v438 = vpop.f32.mrb[0].mxu0
    %v439 = vadd.f32 0.0, %v438
    %v440 = vpop.f32.mrb[0].mxu0
    %441 = vdwg.mxu0
    %v442 = vld [vmem:[%s2] sm:$0xff]
    %v443 = vld [vmem:[%s2 + $0x8] sm:$0xff]
    %v444 = vld [vmem:[%s2 + $0x10] sm:$0xff]
    %v445 = vld [vmem:[%s2 + $0x18] sm:$0xff]
    %v446 = vld [vmem:[%s2 + $0x20] sm:$0xff]
    %v447 = vld [vmem:[%s2 + $0x28] sm:$0xff]
    %v448 = vld [vmem:[%s2 + $0x30] sm:$0xff]
    %v449 = vld [vmem:[%s2 + $0x38] sm:$0xff]
    %v450 = vlaneseq
    %v451 = vshrl.u32 %v450, 7
    %v452 = vsub.s32 0, %v451
    %v453 = vrot.slane %v47, %v452
    %vm454 = vcmask 523264
    %v456 = vsel %vm454, %v442, 0
    %v459 = vsel %vm454, %v443, 0
    %v462 = vsel %vm454, %v444, 0
    %v465 = vsel %vm454, %v445, 0
    %v468 = vsel %vm454, %v446, 0
    %v471 = vsel %vm454, %v447, 0
    %v474 = vsel %vm454, %v448, 0
    %v477 = vsel %vm454, %v449, 0
    %479 = vmatprep.subr.mxu0 0.0
    %480 = vmatpush1.msra.mxu0 %v404
    %481 = vmatprep.subr.mxu0 0.0
    %482 = vmatpush1.msra.mxu0 %v409
    %483 = vmatprep.subr.mxu0 0.0
    %484 = vmatpush1.msra.mxu0 %v414
    %485 = vmatprep.subr.mxu0 0.0
    %486 = vmatpush1.msra.mxu0 %v419
    %487 = vmatprep.subr.mxu0 0.0
    %488 = vmatpush1.msra.mxu0 %v424
    %489 = vmatprep.subr.mxu0 0.0
    %490 = vmatpush1.msra.mxu0 %v429
    %491 = vmatprep.subr.mxu0 0.0
    %492 = vmatpush1.msra.mxu0 %v434
    %493 = vmatprep.subr.mxu0 0.0
    %494 = vmatpush1.msra.mxu0 %v439
    %495 = vmatprep.subr.mxu0 0.0
    %496 = vmatpush1.msra.mxu0 0.0
    %497 = vmatprep.subr.mxu0 0.0
    %498 = vmatpush1.msra.mxu0 0.0
    %499 = vmatprep.subr.mxu0 0.0
    %500 = vmatpush1.msra.mxu0 0.0
    %501 = vmatprep.subr.mxu0 0.0
    %502 = vmatpush1.msra.mxu0 0.0
    %503 = vmatprep.subr.mxu0 0.0
    %504 = vmatpush1.msra.mxu0 0.0
    %505 = vmatprep.subr.mxu0 0.0
    %506 = vmatpush1.msra.mxu0 0.0
    %507 = vmatprep.subr.mxu0 0.0
    %508 = vmatpush1.msra.mxu0 0.0
    %509 = vmatprep.subr.mxu0 0.0
    %510 = vmatpush1.msra.mxu0 0.0
    %511 = vmatprep.subr.mxu0 0.0
    %512 = vmatpush1.msra.mxu0 0.0
    %513 = vmatprep.subr.mxu0 0.0
    %514 = vmatpush1.msra.mxu0 0.0
    %515 = vmatprep.subr.mxu0 0.0
    %516 = vmatpush1.msra.mxu0 0.0
    %517 = vmatprep.subr.mxu0 0.0
    %518 = vmatpush1.msra.mxu0 0.0
    %519 = vmatprep.subr.mxu0 0.0
    %520 = vmatpush1.msra.mxu0 0.0
    %521 = vmatprep.subr.mxu0 0.0
    %522 = vmatpush1.msra.mxu0 0.0
    %523 = vmatprep.subr.mxu0 0.0
    %524 = vmatpush1.msra.mxu0 0.0
    %525 = vmatprep.subr.mxu0 0.0
    %526 = vmatpush1.msra.mxu0 0.0
    %527 = vmatprep.subr.mxu0 0.0
    %528 = vmatpush1.msra.mxu0 0.0
    %529 = vmatprep.subr.mxu0 0.0
    %530 = vmatpush1.msra.mxu0 0.0
    %531 = vmatprep.subr.mxu0 0.0
    %532 = vmatpush1.msra.mxu0 0.0
    %533 = vmatprep.subr.mxu0 0.0
    %534 = vmatpush1.msra.mxu0 0.0
    %535 = vmatprep.subr.mxu0 0.0
    %536 = vmatpush1.msra.mxu0 0.0
    %537 = vmatprep.subr.mxu0 0.0
    %538 = vmatpush1.msra.mxu0 0.0
    %539 = vmatprep.subr.mxu0 0.0
    %540 = vmatpush1.msra.mxu0 0.0
    %541 = vmatprep.subr.mxu0 0.0
    %542 = vmatpush1.msra.mxu0 0.0
    %543 = vmatprep.mubr.f32.mxu0 0.0
    %544 = vmatmul.mubr.f32.gmra.mrb[0].mxu0 %v456
    %v545 = vpop.f32.mrb[0].mxu0
    %v546 = vadd.f32 %v453, %v545
    %v547 = vpop.f32.mrb[0].mxu0
    %548 = vmatprep.mubr.f32.mxu0 0.0
    %549 = vmatmul.mubr.f32.gmra.mrb[0].mxu0 %v459
    %v550 = vpop.f32.mrb[0].mxu0
    %v551 = vadd.f32 %v453, %v550
    %v552 = vpop.f32.mrb[0].mxu0
    %553 = vmatprep.mubr.f32.mxu0 0.0
    %554 = vmatmul.mubr.f32.gmra.mrb[0].mxu0 %v462
    %v555 = vpop.f32.mrb[0].mxu0
    %v556 = vadd.f32 %v453, %v555
    %v557 = vpop.f32.mrb[0].mxu0
    %558 = vmatprep.mubr.f32.mxu0 0.0
    %559 = vmatmul.mubr.f32.gmra.mrb[0].mxu0 %v465
    %v560 = vpop.f32.mrb[0].mxu0
    %v561 = vadd.f32 %v453, %v560
    %v562 = vpop.f32.mrb[0].mxu0
    %563 = vmatprep.mubr.f32.mxu0 0.0
    %564 = vmatmul.mubr.f32.gmra.mrb[0].mxu0 %v468
    %v565 = vpop.f32.mrb[0].mxu0
    %v566 = vadd.f32 %v453, %v565
    %v567 = vpop.f32.mrb[0].mxu0
    %568 = vmatprep.mubr.f32.mxu0 0.0
    %569 = vmatmul.mubr.f32.gmra.mrb[0].mxu0 %v471
    %v570 = vpop.f32.mrb[0].mxu0
    %v571 = vadd.f32 %v453, %v570
    %v572 = vpop.f32.mrb[0].mxu0
    %573 = vmatprep.mubr.f32.mxu0 0.0
    %574 = vmatmul.mubr.f32.gmra.mrb[0].mxu0 %v474
    %v575 = vpop.f32.mrb[0].mxu0
    %v576 = vadd.f32 %v453, %v575
    %v577 = vpop.f32.mrb[0].mxu0
    %578 = vmatprep.mubr.f32.mxu0 0.0
    %579 = vmatmul.mubr.f32.gmra.mrb[0].mxu0 %v477
    %v580 = vpop.f32.mrb[0].mxu0
    %v581 = vadd.f32 %v453, %v580
    %v582 = vpop.f32.mrb[0].mxu0
    %583 = vdwg.mxu0
    %v584 = vmax.f32 %v546, 0.0
    %v585 = vmax.f32 %v551, 0.0
    %v586 = vmax.f32 %v556, 0.0
    %v587 = vmax.f32 %v561, 0.0
    %v588 = vmax.f32 %v566, 0.0
    %v589 = vmax.f32 %v571, 0.0
    %v590 = vmax.f32 %v576, 0.0
    %v591 = vmax.f32 %v581, 0.0
    %v592 = vld [vmem:[%s3] sm:$0xff]
    %v593 = vld [vmem:[%s3 + $0x8] sm:$0xff]
    %v595 = vsel %vm454, %v592, 0
    %v598 = vsel %vm454, %v593, 0
    %600 = vmatprep.subr.mxu0 0.0
    %601 = vmatpush1.msra.mxu0 %v584
    %602 = vmatprep.subr.mxu0 0.0
    %603 = vmatpush1.msra.mxu0 %v585
    %604 = vmatprep.subr.mxu0 0.0
    %605 = vmatpush1.msra.mxu0 %v586
    %606 = vmatprep.subr.mxu0 0.0
    %607 = vmatpush1.msra.mxu0 %v587
    %608 = vmatprep.subr.mxu0 0.0
    %609 = vmatpush1.msra.mxu0 %v588
    %610 = vmatprep.subr.mxu0 0.0
    %611 = vmatpush1.msra.mxu0 %v589
    %612 = vmatprep.subr.mxu0 0.0
    %613 = vmatpush1.msra.mxu0 %v590
    %614 = vmatprep.subr.mxu0 0.0
    %615 = vmatpush1.msra.mxu0 %v591
    %616 = vmatprep.subr.mxu0 0.0
    %617 = vmatpush1.msra.mxu0 0.0
    %618 = vmatprep.subr.mxu0 0.0
    %619 = vmatpush1.msra.mxu0 0.0
    %620 = vmatprep.subr.mxu0 0.0
    %621 = vmatpush1.msra.mxu0 0.0
    %622 = vmatprep.subr.mxu0 0.0
    %623 = vmatpush1.msra.mxu0 0.0
    %624 = vmatprep.subr.mxu0 0.0
    %625 = vmatpush1.msra.mxu0 0.0
    %626 = vmatprep.subr.mxu0 0.0
    %627 = vmatpush1.msra.mxu0 0.0
    %628 = vmatprep.subr.mxu0 0.0
    %629 = vmatpush1.msra.mxu0 0.0
    %630 = vmatprep.subr.mxu0 0.0
    %631 = vmatpush1.msra.mxu0 0.0
    %632 = vmatprep.subr.mxu0 0.0
    %633 = vmatpush1.msra.mxu0 0.0
    %634 = vmatprep.subr.mxu0 0.0
    %635 = vmatpush1.msra.mxu0 0.0
    %636 = vmatprep.subr.mxu0 0.0
    %637 = vmatpush1.msra.mxu0 0.0
    %638 = vmatprep.subr.mxu0 0.0
    %639 = vmatpush1.msra.mxu0 0.0
    %640 = vmatprep.subr.mxu0 0.0
    %641 = vmatpush1.msra.mxu0 0.0
    %642 = vmatprep.subr.mxu0 0.0
    %643 = vmatpush1.msra.mxu0 0.0
    %644 = vmatprep.subr.mxu0 0.0
    %645 = vmatpush1.msra.mxu0 0.0
    %646 = vmatprep.subr.mxu0 0.0
    %647 = vmatpush1.msra.mxu0 0.0
    %648 = vmatprep.subr.mxu0 0.0
    %649 = vmatpush1.msra.mxu0 0.0
    %650 = vmatprep.subr.mxu0 0.0
    %651 = vmatpush1.msra.mxu0 0.0
    %652 = vmatprep.subr.mxu0 0.0
    %653 = vmatpush1.msra.mxu0 0.0
    %654 = vmatprep.subr.mxu0 0.0
    %655 = vmatpush1.msra.mxu0 0.0
    %656 = vmatprep.subr.mxu0 0.0
    %657 = vmatpush1.msra.mxu0 0.0
    %658 = vmatprep.subr.mxu0 0.0
    %659 = vmatpush1.msra.mxu0 0.0
    %660 = vmatprep.subr.mxu0 0.0
    %661 = vmatpush1.msra.mxu0 0.0
    %662 = vmatprep.subr.mxu0 0.0
    %663 = vmatpush1.msra.mxu0 0.0
    %664 = vmatprep.mubr.f32.mxu0 0.0
    %665 = vmatmul.mubr.f32.gmra.mrb[0].mxu0 %v595
    %v666 = vpop.f32.mrb[0].mxu0
    %v667 = vadd.f32 0.0, %v666
    %v668 = vpop.f32.mrb[0].mxu0
    %669 = vmatprep.mubr.f32.mxu0 0.0
    %670 = vmatmul.mubr.f32.gmra.mrb[0].mxu0 %v598
    %v671 = vpop.f32.mrb[0].mxu0
    %v672 = vadd.f32 0.0, %v671
    %v673 = vpop.f32.mrb[0].mxu0
    %674 = vdwg.mxu0
    %v675 = vlaneseq
    %v676 = vshrl.u32 %v675, 7
    %v677 = vsub.s32 0, %v676
    %v678 = vrot.slane %v48, %v677
    %v680 = vsel %vm175, %v667, 0
    %v683 = vsel %vm175, %v672, 0
    %685 = vmatprep.subr.mxu0 0.0
    %686 = vmatpush1.msra.mxu0 %v38
    %687 = vmatprep.subr.mxu0 0.0
    %688 = vmatpush1.msra.mxu0 %v39
    %689 = vmatprep.subr.mxu0 0.0
    %690 = vmatpush1.msra.mxu0 %v40
    %691 = vmatprep.subr.mxu0 0.0
    %692 = vmatpush1.msra.mxu0 %v41
    %693 = vmatprep.subr.mxu0 0.0
    %694 = vmatpush1.msra.mxu0 0.0
    %695 = vmatprep.subr.mxu0 0.0
    %696 = vmatpush1.msra.mxu0 0.0
    %697 = vmatprep.subr.mxu0 0.0
    %698 = vmatpush1.msra.mxu0 0.0
    %699 = vmatprep.subr.mxu0 0.0
    %700 = vmatpush1.msra.mxu0 0.0
    %701 = vmatprep.subr.mxu0 0.0
    %702 = vmatpush1.msra.mxu0 0.0
    %703 = vmatprep.subr.mxu0 0.0
    %704 = vmatpush1.msra.mxu0 0.0
    %705 = vmatprep.subr.mxu0 0.0
    %706 = vmatpush1.msra.mxu0 0.0
    %707 = vmatprep.subr.mxu0 0.0
    %708 = vmatpush1.msra.mxu0 0.0
    %709 = vmatprep.subr.mxu0 0.0
    %710 = vmatpush1.msra.mxu0 0.0
    %711 = vmatprep.subr.mxu0 0.0
    %712 = vmatpush1.msra.mxu0 0.0
    %713 = vmatprep.subr.mxu0 0.0
    %714 = vmatpush1.msra.mxu0 0.0
    %715 = vmatprep.subr.mxu0 0.0
    %716 = vmatpush1.msra.mxu0 0.0
    %717 = vmatprep.subr.mxu0 0.0
    %718 = vmatpush1.msra.mxu0 0.0
    %719 = vmatprep.subr.mxu0 0.0
    %720 = vmatpush1.msra.mxu0 0.0
    %721 = vmatprep.subr.mxu0 0.0
    %722 = vmatpush1.msra.mxu0 0.0
    %723 = vmatprep.subr.mxu0 0.0
    %724 = vmatpush1.msra.mxu0 0.0
    %725 = vmatprep.subr.mxu0 0.0
    %726 = vmatpush1.msra.mxu0 0.0
    %727 = vmatprep.subr.mxu0 0.0
    %728 = vmatpush1.msra.mxu0 0.0
    %729 = vmatprep.subr.mxu0 0.0
    %730 = vmatpush1.msra.mxu0 0.0
    %731 = vmatprep.subr.mxu0 0.0
    %732 = vmatpush1.msra.mxu0 0.0
    %733 = vmatprep.subr.mxu0 0.0
    %734 = vmatpush1.msra.mxu0 0.0
    %735 = vmatprep.subr.mxu0 0.0
    %736 = vmatpush1.msra.mxu0 0.0
    %737 = vmatprep.subr.mxu0 0.0
    %738 = vmatpush1.msra.mxu0 0.0
    %739 = vmatprep.subr.mxu0 0.0
    %740 = vmatpush1.msra.mxu0 0.0
    %741 = vmatprep.subr.mxu0 0.0
    %742 = vmatpush1.msra.mxu0 0.0
    %743 = vmatprep.subr.mxu0 0.0
    %744 = vmatpush1.msra.mxu0 0.0
    %745 = vmatprep.subr.mxu0 0.0
    %746 = vmatpush1.msra.mxu0 0.0
    %747 = vmatprep.subr.mxu0 0.0
    %748 = vmatpush1.msra.mxu0 0.0
    %749 = vmatprep.mubr.f32.mxu0 0.0
    %750 = vmatmul.mubr.f32.gmra.mrb[0].mxu0 %v680
    %v751 = vpop.f32.mrb[0].mxu0
    %v752 = vadd.f32 %v678, %v751
    %v753 = vpop.f32.mrb[0].mxu0
    %754 = vmatprep.mubr.f32.mxu0 0.0
    %755 = vmatmul.mubr.f32.gmra.mrb[0].mxu0 %v683
    %v756 = vpop.f32.mrb[0].mxu0
    %v757 = vadd.f32 %v678, %v756
    %v758 = vpop.f32.mrb[0].mxu0
    %759 = vdwg.mxu0
    %v760 = vmax.f32 %v752, 0.0
    %v761 = vmax.f32 %v757, 0.0
    %v762 = vlaneseq
    %v763 = vshrl.u32 %v762, 7
    %v764 = vsub.s32 0, %v763
    %v765 = vrot.slane %v49, %v764
    %v767 = vsel %vm175, %v760, 0
    %v770 = vsel %vm175, %v761, 0
    %772 = vmatprep.subr.mxu0 0.0
    %773 = vmatpush1.msra.mxu0 %v42
    %774 = vmatprep.subr.mxu0 0.0
    %775 = vmatpush1.msra.mxu0 %v43
    %776 = vmatprep.subr.mxu0 0.0
    %777 = vmatpush1.msra.mxu0 %v44
    %778 = vmatprep.subr.mxu0 0.0
    %779 = vmatpush1.msra.mxu0 %v45
    %780 = vmatprep.subr.mxu0 0.0
    %781 = vmatpush1.msra.mxu0 0.0
    %782 = vmatprep.subr.mxu0 0.0
    %783 = vmatpush1.msra.mxu0 0.0
    %784 = vmatprep.subr.mxu0 0.0
    %785 = vmatpush1.msra.mxu0 0.0
    %786 = vmatprep.subr.mxu0 0.0
    %787 = vmatpush1.msra.mxu0 0.0
    %788 = vmatprep.subr.mxu0 0.0
    %789 = vmatpush1.msra.mxu0 0.0
    %790 = vmatprep.subr.mxu0 0.0
    %791 = vmatpush1.msra.mxu0 0.0
    %792 = vmatprep.subr.mxu0 0.0
    %793 = vmatpush1.msra.mxu0 0.0
    %794 = vmatprep.subr.mxu0 0.0
    %795 = vmatpush1.msra.mxu0 0.0
    %796 = vmatprep.subr.mxu0 0.0
    %797 = vmatpush1.msra.mxu0 0.0
    %798 = vmatprep.subr.mxu0 0.0
    %799 = vmatpush1.msra.mxu0 0.0
    %800 = vmatprep.subr.mxu0 0.0
    %801 = vmatpush1.msra.mxu0 0.0
    %802 = vmatprep.subr.mxu0 0.0
    %803 = vmatpush1.msra.mxu0 0.0
    %804 = vmatprep.subr.mxu0 0.0
    %805 = vmatpush1.msra.mxu0 0.0
    %806 = vmatprep.subr.mxu0 0.0
    %807 = vmatpush1.msra.mxu0 0.0
    %808 = vmatprep.subr.mxu0 0.0
    %809 = vmatpush1.msra.mxu0 0.0
    %810 = vmatprep.subr.mxu0 0.0
    %811 = vmatpush1.msra.mxu0 0.0
    %812 = vmatprep.subr.mxu0 0.0
    %813 = vmatpush1.msra.mxu0 0.0
    %814 = vmatprep.subr.mxu0 0.0
    %815 = vmatpush1.msra.mxu0 0.0
    %816 = vmatprep.subr.mxu0 0.0
    %817 = vmatpush1.msra.mxu0 0.0
    %818 = vmatprep.subr.mxu0 0.0
    %819 = vmatpush1.msra.mxu0 0.0
    %820 = vmatprep.subr.mxu0 0.0
    %821 = vmatpush1.msra.mxu0 0.0
    %822 = vmatprep.subr.mxu0 0.0
    %823 = vmatpush1.msra.mxu0 0.0
    %824 = vmatprep.subr.mxu0 0.0
    %825 = vmatpush1.msra.mxu0 0.0
    %826 = vmatprep.subr.mxu0 0.0
    %827 = vmatpush1.msra.mxu0 0.0
    %828 = vmatprep.subr.mxu0 0.0
    %829 = vmatpush1.msra.mxu0 0.0
    %830 = vmatprep.subr.mxu0 0.0
    %831 = vmatpush1.msra.mxu0 0.0
    %832 = vmatprep.subr.mxu0 0.0
    %833 = vmatpush1.msra.mxu0 0.0
    %834 = vmatprep.subr.mxu0 0.0
    %835 = vmatpush1.msra.mxu0 0.0
    %836 = vmatprep.mubr.f32.mxu0 0.0
    %837 = vmatmul.mubr.f32.gmra.mrb[0].mxu0 %v767
    %v838 = vpop.f32.mrb[0].mxu0
    %v839 = vadd.f32 %v765, %v838
    %v840 = vpop.f32.mrb[0].mxu0
    %841 = vmatprep.mubr.f32.mxu0 0.0
    %842 = vmatmul.mubr.f32.gmra.mrb[0].mxu0 %v770
    %v843 = vpop.f32.mrb[0].mxu0
    %v844 = vadd.f32 %v765, %v843
    %v845 = vpop.f32.mrb[0].mxu0
    %846 = vdwg.mxu0
    %v847 = vadd.f32 %v839, %v667
    %v848 = vadd.f32 %v844, %v672
    %v849 = vsel %vm175, %v847, 0.0
    %850 = vadd.xlane.f32.xlu0 %v849
    %v851 = vpop.xlane.xlu0 %850
    %v852 = vsel %vm175, %v848, 0.0
    %853 = vadd.xlane.f32.xlu0 %v852
    %v854 = vpop.xlane.xlu0 %853
    %v855 = vrcp.pop 32.0
    %v856 = vmul.f32 %v851, %v855
    %v857 = vmul.f32 %v854, %v855
    %v858 = vsub.f32 %v847, %v856
    %v859 = vsub.f32 %v848, %v857
    %v860 = vmul.f32 %v858, %v858
    %v861 = vmul.f32 %v859, %v859
    %v862 = vsel %vm175, %v860, 0.0
    %863 = vadd.xlane.f32.xlu0 %v862
    %v864 = vpop.xlane.xlu0 %863
    %v865 = vsel %vm175, %v861, 0.0
    %866 = vadd.xlane.f32.xlu0 %v865
    %v867 = vpop.xlane.xlu0 %866
    %v868 = vmul.f32 %v864, %v855
    %v869 = vmul.f32 %v867, %v855
    %v870 = vadd.f32 %v868, 1e-06
    %v871 = vadd.f32 %v869, 1e-06
    %v872 = vrsqrt.pop %v870
    %v873 = vrsqrt.pop %v871
    %v874 = vmul.f32 %v858, %v872
    %v875 = vmul.f32 %v859, %v873
    %v876 = vlaneseq
    %v877 = vshrl.u32 %v876, 7
    %v878 = vsub.s32 0, %v877
    %v879 = vrot.slane %v50, %v878
    %v880 = vmul.f32 %v874, %v879
    %v881 = vmul.f32 %v875, %v879
    %v882 = vlaneseq
    %v883 = vshrl.u32 %v882, 7
    %v884 = vsub.s32 0, %v883
    %v885 = vrot.slane %v51, %v884
    %v886 = vadd.f32 %v880, %v885
    %v887 = vadd.f32 %v881, %v885
    %v888 = vmul.f32 %v667, %v667
    %v889 = vmul.f32 %v672, %v672
    %v890 = vsel %vm175, %v888, 0.0
    %891 = vadd.xlane.f32.xlu0 %v890
    %v892 = vpop.xlane.xlu0 %891
    %v893 = vsel %vm175, %v889, 0.0
    %894 = vadd.xlane.f32.xlu0 %v893
    %v895 = vpop.xlane.xlu0 %894
    %v896 = vmul.f32 %v886, %v886
    %v897 = vmul.f32 %v887, %v887
    %v898 = vsel %vm175, %v896, 0.0
    %899 = vadd.xlane.f32.xlu0 %v898
    %v900 = vpop.xlane.xlu0 %899
    %v901 = vsel %vm175, %v897, 0.0
    %902 = vadd.xlane.f32.xlu0 %v901
    %v903 = vpop.xlane.xlu0 %902
    %v904 = vadd.f32 %v892, %v900
    %v905 = vadd.f32 %v895, %v903
    %v906 = vadd.f32 %v904, 1e-12
    %v907 = vadd.f32 %v905, 1e-12
    %v908 = vrsqrt.pop %v906
    %v909 = vrsqrt.pop %v907
    %v910 = vmul.f32 %v908, 3.3333333
    %v911 = vmul.f32 %v909, 3.3333333
    %v912 = vmul.f32 %v667, %v910
    %v913 = vmul.f32 %v672, %v911
    %v914 = vmul.f32 %v667, %v908
    %v915 = vmul.f32 %v672, %v909
    %v916 = vmul.f32 %v886, %v910
    %v917 = vmul.f32 %v887, %v911
    %v918 = vmul.f32 %v886, %v908
    %v919 = vmul.f32 %v887, %v909
    %v921 = vsel %vm175, %v916, 0
    %v924 = vsel %vm175, %v917, 0
    %v927 = vsel %vm175, %v918, 0
    %v930 = vsel %vm175, %v919, 0
    %932 = vmatprep.subr.mxu0 0.0
    %933 = vmatpush1.xpose.msra.mxu0 %v927
    %934 = vmatprep.subr.mxu0 0.0
    %935 = vmatpush1.xpose.msra.mxu0 %v930
    %936 = vmatprep.subr.mxu0 0.0
    %937 = vmatpush1.xpose.msra.mxu0 0.0
    %938 = vmatprep.subr.mxu0 0.0
    %939 = vmatpush1.xpose.msra.mxu0 0.0
    %940 = vmatprep.subr.mxu0 0.0
    %941 = vmatpush1.xpose.msra.mxu0 0.0
    %942 = vmatprep.subr.mxu0 0.0
    %943 = vmatpush1.xpose.msra.mxu0 0.0
    %944 = vmatprep.subr.mxu0 0.0
    %945 = vmatpush1.xpose.msra.mxu0 0.0
    %946 = vmatprep.subr.mxu0 0.0
    %947 = vmatpush1.xpose.msra.mxu0 0.0
    %948 = vmatprep.subr.mxu0 0.0
    %949 = vmatpush1.xpose.msra.mxu0 0.0
    %950 = vmatprep.subr.mxu0 0.0
    %951 = vmatpush1.xpose.msra.mxu0 0.0
    %952 = vmatprep.subr.mxu0 0.0
    %953 = vmatpush1.xpose.msra.mxu0 0.0
    %954 = vmatprep.subr.mxu0 0.0
    %955 = vmatpush1.xpose.msra.mxu0 0.0
    %956 = vmatprep.subr.mxu0 0.0
    %957 = vmatpush1.xpose.msra.mxu0 0.0
    %958 = vmatprep.subr.mxu0 0.0
    %959 = vmatpush1.xpose.msra.mxu0 0.0
    %960 = vmatprep.subr.mxu0 0.0
    %961 = vmatpush1.xpose.msra.mxu0 0.0
    %962 = vmatprep.subr.mxu0 0.0
    %963 = vmatpush1.xpose.msra.mxu0 0.0
    %964 = vmatprep.subr.mxu0 0.0
    %965 = vmatpush1.xpose.msra.mxu0 0.0
    %966 = vmatprep.subr.mxu0 0.0
    %967 = vmatpush1.xpose.msra.mxu0 0.0
    %968 = vmatprep.subr.mxu0 0.0
    %969 = vmatpush1.xpose.msra.mxu0 0.0
    %970 = vmatprep.subr.mxu0 0.0
    %971 = vmatpush1.xpose.msra.mxu0 0.0
    %972 = vmatprep.subr.mxu0 0.0
    %973 = vmatpush1.xpose.msra.mxu0 0.0
    %974 = vmatprep.subr.mxu0 0.0
    %975 = vmatpush1.xpose.msra.mxu0 0.0
    %976 = vmatprep.subr.mxu0 0.0
    %977 = vmatpush1.xpose.msra.mxu0 0.0
    %978 = vmatprep.subr.mxu0 0.0
    %979 = vmatpush1.xpose.msra.mxu0 0.0
    %980 = vmatprep.subr.mxu0 0.0
    %981 = vmatpush1.xpose.msra.mxu0 0.0
    %982 = vmatprep.subr.mxu0 0.0
    %983 = vmatpush1.xpose.msra.mxu0 0.0
    %984 = vmatprep.subr.mxu0 0.0
    %985 = vmatpush1.xpose.msra.mxu0 0.0
    %986 = vmatprep.subr.mxu0 0.0
    %987 = vmatpush1.xpose.msra.mxu0 0.0
    %988 = vmatprep.subr.mxu0 0.0
    %989 = vmatpush1.xpose.msra.mxu0 0.0
    %990 = vmatprep.subr.mxu0 0.0
    %991 = vmatpush1.xpose.msra.mxu0 0.0
    %992 = vmatprep.subr.mxu0 0.0
    %993 = vmatpush1.xpose.msra.mxu0 0.0
    %994 = vmatprep.subr.mxu0 0.0
    %995 = vmatpush1.xpose.msra.mxu0 0.0
    %996 = vmatprep.mubr.f32.mxu0 0.0
    %997 = vmatmul.mubr.f32.gmra.mrb[0].mxu0 %v921
    %v998 = vpop.f32.mrb[0].mxu0
    %v999 = vadd.f32 0.0, %v998
    %v1000 = vpop.f32.mrb[0].mxu0
    %1001 = vmatprep.mubr.f32.mxu0 0.0
    %1002 = vmatmul.mubr.f32.gmra.mrb[0].mxu0 %v924
    %v1003 = vpop.f32.mrb[0].mxu0
    %v1004 = vpop.f32.mrb[0].mxu0
    %1005 = vdwg.mxu0
    %v1007 = vsel %vm175, %v912, 0
    %v1010 = vsel %vm175, %v913, 0
    %v1013 = vsel %vm175, %v914, 0
    %v1016 = vsel %vm175, %v915, 0
    %1018 = vmatprep.subr.mxu0 0.0
    %1019 = vmatpush1.xpose.msra.mxu0 %v1013
    %1020 = vmatprep.subr.mxu0 0.0
    %1021 = vmatpush1.xpose.msra.mxu0 %v1016
    %1022 = vmatprep.subr.mxu0 0.0
    %1023 = vmatpush1.xpose.msra.mxu0 0.0
    %1024 = vmatprep.subr.mxu0 0.0
    %1025 = vmatpush1.xpose.msra.mxu0 0.0
    %1026 = vmatprep.subr.mxu0 0.0
    %1027 = vmatpush1.xpose.msra.mxu0 0.0
    %1028 = vmatprep.subr.mxu0 0.0
    %1029 = vmatpush1.xpose.msra.mxu0 0.0
    %1030 = vmatprep.subr.mxu0 0.0
    %1031 = vmatpush1.xpose.msra.mxu0 0.0
    %1032 = vmatprep.subr.mxu0 0.0
    %1033 = vmatpush1.xpose.msra.mxu0 0.0
    %1034 = vmatprep.subr.mxu0 0.0
    %1035 = vmatpush1.xpose.msra.mxu0 0.0
    %1036 = vmatprep.subr.mxu0 0.0
    %1037 = vmatpush1.xpose.msra.mxu0 0.0
    %1038 = vmatprep.subr.mxu0 0.0
    %1039 = vmatpush1.xpose.msra.mxu0 0.0
    %1040 = vmatprep.subr.mxu0 0.0
    %1041 = vmatpush1.xpose.msra.mxu0 0.0
    %1042 = vmatprep.subr.mxu0 0.0
    %1043 = vmatpush1.xpose.msra.mxu0 0.0
    %1044 = vmatprep.subr.mxu0 0.0
    %1045 = vmatpush1.xpose.msra.mxu0 0.0
    %1046 = vmatprep.subr.mxu0 0.0
    %1047 = vmatpush1.xpose.msra.mxu0 0.0
    %1048 = vmatprep.subr.mxu0 0.0
    %1049 = vmatpush1.xpose.msra.mxu0 0.0
    %1050 = vmatprep.subr.mxu0 0.0
    %1051 = vmatpush1.xpose.msra.mxu0 0.0
    %1052 = vmatprep.subr.mxu0 0.0
    %1053 = vmatpush1.xpose.msra.mxu0 0.0
    %1054 = vmatprep.subr.mxu0 0.0
    %1055 = vmatpush1.xpose.msra.mxu0 0.0
    %1056 = vmatprep.subr.mxu0 0.0
    %1057 = vmatpush1.xpose.msra.mxu0 0.0
    %1058 = vmatprep.subr.mxu0 0.0
    %1059 = vmatpush1.xpose.msra.mxu0 0.0
    %1060 = vmatprep.subr.mxu0 0.0
    %1061 = vmatpush1.xpose.msra.mxu0 0.0
    %1062 = vmatprep.subr.mxu0 0.0
    %1063 = vmatpush1.xpose.msra.mxu0 0.0
    %1064 = vmatprep.subr.mxu0 0.0
    %1065 = vmatpush1.xpose.msra.mxu0 0.0
    %1066 = vmatprep.subr.mxu0 0.0
    %1067 = vmatpush1.xpose.msra.mxu0 0.0
    %1068 = vmatprep.subr.mxu0 0.0
    %1069 = vmatpush1.xpose.msra.mxu0 0.0
    %1070 = vmatprep.subr.mxu0 0.0
    %1071 = vmatpush1.xpose.msra.mxu0 0.0
    %1072 = vmatprep.subr.mxu0 0.0
    %1073 = vmatpush1.xpose.msra.mxu0 0.0
    %1074 = vmatprep.subr.mxu0 0.0
    %1075 = vmatpush1.xpose.msra.mxu0 0.0
    %1076 = vmatprep.subr.mxu0 0.0
    %1077 = vmatpush1.xpose.msra.mxu0 0.0
    %1078 = vmatprep.subr.mxu0 0.0
    %1079 = vmatpush1.xpose.msra.mxu0 0.0
    %1080 = vmatprep.subr.mxu0 0.0
    %1081 = vmatpush1.xpose.msra.mxu0 0.0
    %1082 = vmatprep.mubr.f32.mxu0 0.0
    %1083 = vmatmul.mubr.f32.gmra.mrb[0].mxu0 %v1007
    %v1084 = vpop.f32.mrb[0].mxu0
    %v1085 = vadd.f32 %v999, %v1084
    %v1086 = vpop.f32.mrb[0].mxu0
    %1087 = vmatprep.mubr.f32.mxu0 0.0
    %1088 = vmatmul.mubr.f32.gmra.mrb[0].mxu0 %v1010
    %v1089 = vpop.f32.mrb[0].mxu0
    %v1090 = vpop.f32.mrb[0].mxu0
    %1091 = vdwg.mxu0
    %v1092 = vmul.f32 %v1085, 1.442695
    %v1093 = vpow.pop %v1092
    %v1094 = vlaneseq
    %v1095 = vshrl.u32 %v1094, 7
    %v1096 = vlaneseq
    %v1097 = vand.u32 %v1096, 127
    %vm1098 = vcmp.eq.s32.totalorder %v1095, %v1097
    %v1099 = vsel %vm1098, 0.0, %v1093
    %v1100 = vld [vmem:[%s7] sm:$0xff]
    %v1101 = vmul.f32 %v1099, %v1100
    %v1102 = vsel %vm65, %v1101, 0.0
    %1103 = vadd.xlane.f32.xlu0 %v1102
    %v1104 = vpop.xlane.xlu0 %1103
    %v1105 = vsub.f32 1.0, %v1100
    %v1106 = vmul.f32 %v1099, %v1105
    %v1107 = vsel %vm65, %v1106, 0.0
    %1108 = vadd.xlane.f32.xlu0 %v1107
    %v1109 = vpop.xlane.xlu0 %1108
    %v1110 = vlog2.pop %v1104
    %v1111 = vmul.f32 %v1110, 0.6931472
    %v1112 = vlog2.pop %v1109
    %v1113 = vmul.f32 %v1112, 0.6931472
    %v1114 = vsub.f32 %v1111, %v1113
    %vm1115 = vcmask 7168
    %v1116 = vsel %vm1115, %v1114, 0.0
    %1117 = vadd.xlane.f32.xlu0 %v1116
    %v1118 = vpop.xlane.xlu0 %1117
    %v1119 = vrot.slane %v1118, 4
    %v1120 = vadd.f32 %v1118, %v1119
    %v1121 = vrot.slane %v1120, 2
    %v1122 = vadd.f32 %v1120, %v1121
    %v1123 = vrot.slane %v1122, 1
    %v1124 = vadd.f32 %v1122, %v1123
    %s1125 = vtos %v1124
    %v1126 = vstv %s1125
    %v1127 = vadd.f32 %v1126, 38.816242
    %vm1128 = vcmask 0
    %1129 = vst.msk [vmem:[#allocation2] sm:$0x1] %vm1128, %v1127
    %v1131 = vsel %vm175, %v886, 0
    %v1134 = vsel %vm175, %v887, 0
    %1136 = vmatprep.subr.mxu0 0.0
    %1137 = vmatpush1.msra.mxu0 %v56
    %1138 = vmatprep.subr.mxu0 0.0
    %1139 = vmatpush1.msra.mxu0 %v57
    %1140 = vmatprep.subr.mxu0 0.0
    %1141 = vmatpush1.msra.mxu0 %v58
    %1142 = vmatprep.subr.mxu0 0.0
    %1143 = vmatpush1.msra.mxu0 %v59
    %1144 = vmatprep.subr.mxu0 0.0
    %1145 = vmatpush1.msra.mxu0 0.0
    %1146 = vmatprep.subr.mxu0 0.0
    %1147 = vmatpush1.msra.mxu0 0.0
    %1148 = vmatprep.subr.mxu0 0.0
    %1149 = vmatpush1.msra.mxu0 0.0
    %1150 = vmatprep.subr.mxu0 0.0
    %1151 = vmatpush1.msra.mxu0 0.0
    %1152 = vmatprep.subr.mxu0 0.0
    %1153 = vmatpush1.msra.mxu0 0.0
    %1154 = vmatprep.subr.mxu0 0.0
    %1155 = vmatpush1.msra.mxu0 0.0
    %1156 = vmatprep.subr.mxu0 0.0
    %1157 = vmatpush1.msra.mxu0 0.0
    %1158 = vmatprep.subr.mxu0 0.0
    %1159 = vmatpush1.msra.mxu0 0.0
    %1160 = vmatprep.subr.mxu0 0.0
    %1161 = vmatpush1.msra.mxu0 0.0
    %1162 = vmatprep.subr.mxu0 0.0
    %1163 = vmatpush1.msra.mxu0 0.0
    %1164 = vmatprep.subr.mxu0 0.0
    %1165 = vmatpush1.msra.mxu0 0.0
    %1166 = vmatprep.subr.mxu0 0.0
    %1167 = vmatpush1.msra.mxu0 0.0
    %1168 = vmatprep.subr.mxu0 0.0
    %1169 = vmatpush1.msra.mxu0 0.0
    %1170 = vmatprep.subr.mxu0 0.0
    %1171 = vmatpush1.msra.mxu0 0.0
    %1172 = vmatprep.subr.mxu0 0.0
    %1173 = vmatpush1.msra.mxu0 0.0
    %1174 = vmatprep.subr.mxu0 0.0
    %1175 = vmatpush1.msra.mxu0 0.0
    %1176 = vmatprep.subr.mxu0 0.0
    %1177 = vmatpush1.msra.mxu0 0.0
    %1178 = vmatprep.subr.mxu0 0.0
    %1179 = vmatpush1.msra.mxu0 0.0
    %1180 = vmatprep.subr.mxu0 0.0
    %1181 = vmatpush1.msra.mxu0 0.0
    %1182 = vmatprep.subr.mxu0 0.0
    %1183 = vmatpush1.msra.mxu0 0.0
    %1184 = vmatprep.subr.mxu0 0.0
    %1185 = vmatpush1.msra.mxu0 0.0
    %1186 = vmatprep.subr.mxu0 0.0
    %1187 = vmatpush1.msra.mxu0 0.0
    %1188 = vmatprep.subr.mxu0 0.0
    %1189 = vmatpush1.msra.mxu0 0.0
    %1190 = vmatprep.subr.mxu0 0.0
    %1191 = vmatpush1.msra.mxu0 0.0
    %1192 = vmatprep.subr.mxu0 0.0
    %1193 = vmatpush1.msra.mxu0 0.0
    %1194 = vmatprep.subr.mxu0 0.0
    %1195 = vmatpush1.msra.mxu0 0.0
    %1196 = vmatprep.subr.mxu0 0.0
    %1197 = vmatpush1.msra.mxu0 0.0
    %1198 = vmatprep.subr.mxu0 0.0
    %1199 = vmatpush1.msra.mxu0 0.0
    %1200 = vmatprep.mubr.f32.mxu0 0.0
    %1201 = vmatmul.mubr.f32.gmra.mrb[0].mxu0 %v1131
    %v1202 = vpop.f32.mrb[0].mxu0
    %v1203 = vadd.f32 0.0, %v1202
    %v1204 = vpop.f32.mrb[0].mxu0
    %1205 = vmatprep.mubr.f32.mxu0 0.0
    %1206 = vmatmul.mubr.f32.gmra.mrb[0].mxu0 %v1134
    %v1207 = vpop.f32.mrb[0].mxu0
    %v1208 = vadd.f32 0.0, %v1207
    %v1209 = vpop.f32.mrb[0].mxu0
    %1210 = vdwg.mxu0
    %1211 = vmatprep.subr.mxu0 0.0
    %1212 = vmatpush1.msra.mxu0 %v52
    %1213 = vmatprep.subr.mxu0 0.0
    %1214 = vmatpush1.msra.mxu0 %v53
    %1215 = vmatprep.subr.mxu0 0.0
    %1216 = vmatpush1.msra.mxu0 %v54
    %1217 = vmatprep.subr.mxu0 0.0
    %1218 = vmatpush1.msra.mxu0 %v55
    %1219 = vmatprep.subr.mxu0 0.0
    %1220 = vmatpush1.msra.mxu0 0.0
    %1221 = vmatprep.subr.mxu0 0.0
    %1222 = vmatpush1.msra.mxu0 0.0
    %1223 = vmatprep.subr.mxu0 0.0
    %1224 = vmatpush1.msra.mxu0 0.0
    %1225 = vmatprep.subr.mxu0 0.0
    %1226 = vmatpush1.msra.mxu0 0.0
    %1227 = vmatprep.subr.mxu0 0.0
    %1228 = vmatpush1.msra.mxu0 0.0
    %1229 = vmatprep.subr.mxu0 0.0
    %1230 = vmatpush1.msra.mxu0 0.0
    %1231 = vmatprep.subr.mxu0 0.0
    %1232 = vmatpush1.msra.mxu0 0.0
    %1233 = vmatprep.subr.mxu0 0.0
    %1234 = vmatpush1.msra.mxu0 0.0
    %1235 = vmatprep.subr.mxu0 0.0
    %1236 = vmatpush1.msra.mxu0 0.0
    %1237 = vmatprep.subr.mxu0 0.0
    %1238 = vmatpush1.msra.mxu0 0.0
    %1239 = vmatprep.subr.mxu0 0.0
    %1240 = vmatpush1.msra.mxu0 0.0
    %1241 = vmatprep.subr.mxu0 0.0
    %1242 = vmatpush1.msra.mxu0 0.0
    %1243 = vmatprep.subr.mxu0 0.0
    %1244 = vmatpush1.msra.mxu0 0.0
    %1245 = vmatprep.subr.mxu0 0.0
    %1246 = vmatpush1.msra.mxu0 0.0
    %1247 = vmatprep.subr.mxu0 0.0
    %1248 = vmatpush1.msra.mxu0 0.0
    %1249 = vmatprep.subr.mxu0 0.0
    %1250 = vmatpush1.msra.mxu0 0.0
    %1251 = vmatprep.subr.mxu0 0.0
    %1252 = vmatpush1.msra.mxu0 0.0
    %1253 = vmatprep.subr.mxu0 0.0
    %1254 = vmatpush1.msra.mxu0 0.0
    %1255 = vmatprep.subr.mxu0 0.0
    %1256 = vmatpush1.msra.mxu0 0.0
    %1257 = vmatprep.subr.mxu0 0.0
    %1258 = vmatpush1.msra.mxu0 0.0
    %1259 = vmatprep.subr.mxu0 0.0
    %1260 = vmatpush1.msra.mxu0 0.0
    %1261 = vmatprep.subr.mxu0 0.0
    %1262 = vmatpush1.msra.mxu0 0.0
    %1263 = vmatprep.subr.mxu0 0.0
    %1264 = vmatpush1.msra.mxu0 0.0
    %1265 = vmatprep.subr.mxu0 0.0
    %1266 = vmatpush1.msra.mxu0 0.0
    %1267 = vmatprep.subr.mxu0 0.0
    %1268 = vmatpush1.msra.mxu0 0.0
    %1269 = vmatprep.subr.mxu0 0.0
    %1270 = vmatpush1.msra.mxu0 0.0
    %1271 = vmatprep.subr.mxu0 0.0
    %1272 = vmatpush1.msra.mxu0 0.0
    %1273 = vmatprep.subr.mxu0 0.0
    %1274 = vmatpush1.msra.mxu0 0.0
    %1275 = vmatprep.mubr.f32.mxu0 0.0
    %1276 = vmatmul.mubr.f32.gmra.mrb[0].mxu0 %v680
    %v1277 = vpop.f32.mrb[0].mxu0
    %v1278 = vadd.f32 %v1203, %v1277
    %v1279 = vpop.f32.mrb[0].mxu0
    %1280 = vmatprep.mubr.f32.mxu0 0.0
    %1281 = vmatmul.mubr.f32.gmra.mrb[0].mxu0 %v683
    %v1282 = vpop.f32.mrb[0].mxu0
    %v1283 = vadd.f32 %v1208, %v1282
    %v1284 = vpop.f32.mrb[0].mxu0
    %1285 = vdwg.mxu0
    %v1286 = vlaneseq
    %v1287 = vshrl.u32 %v1286, 7
    %v1288 = vsub.s32 0, %v1287
    %v1289 = vrot.slane %v60, %v1288
    %v1290 = vadd.f32 %v1278, %v1289
    %v1291 = vadd.f32 %v1283, %v1289
    %1292 = vmax.xlane.f32.xlu0 %v1290
    %v1293 = vpop.xlane.xlu0 %1292
    %1294 = vmax.xlane.f32.xlu0 %v1291
    %v1295 = vpop.xlane.xlu0 %1294
    %v1296 = vsub.f32 %v1290, %v1293
    %v1297 = vsub.f32 %v1291, %v1295
    %v1298 = vmul.f32 %v1296, 1.442695
    %v1299 = vpow.pop %v1298
    %v1300 = vmul.f32 %v1297, 1.442695
    %v1301 = vpow.pop %v1300
    %1302 = vadd.xlane.f32.xlu0 %v1299
    %v1303 = vpop.xlane.xlu0 %1302
    %1304 = vadd.xlane.f32.xlu0 %v1301
    %v1305 = vpop.xlane.xlu0 %1304
    %v1306 = vlog2.pop %v1303
    %v1307 = vmul.f32 %v1306, 0.6931472
    %v1308 = vlog2.pop %v1305
    %v1309 = vmul.f32 %v1308, 0.6931472
    %v1310 = vadd.f32 %v1307, %v1293
    %v1311 = vadd.f32 %v1309, %v1295
    %v1312 = vsub.f32 %v1290, %v1310
    %v1313 = vsub.f32 %v1291, %v1311
    %1314 = vst [vmem:[%s8] sm:$0xff] %v1312
    %1315 = vst [vmem:[%s8 + $0x8] sm:$0xff] %v1313
    // Predicated region
    $region34: #{gcn_net_forward.1} parent=1 // pred_check
      _
    $region35: #{gcn_net_forward.1} parent=1 // pred_check_branch
      %1317 = sbr.rel (0) target = $region37
    $region36: #{gcn_net_forward.1} parent=1 // pred_region
      _
    $region37: #{gcn_net_forward.1} parent=1 // pred_fallthru
      _
    // Predicated region
    $region38: #{gcn_net_forward.1} parent=1 // pred_check
      _
    $region39: #{gcn_net_forward.1} parent=1 // pred_check_branch
      %1319 = sbr.rel (0) target = $region41
    $region40: #{gcn_net_forward.1} parent=1 // pred_region
      %s1321 = ssub.s32 16, 16
      %1322 = vsyncadd [#allocation3], %s1321
      %s1324 = sshll.u32 [#allocation2], 4
      %s1325 = int_to_ptr.vmem [resolvable:$true] %s1324
      %1327 = dma.vmem_to_hbm [thread:$0]  %s1325, 16, %s9, [#allocation3]
    $region41: #{gcn_net_forward.1} parent=1 // pred_fallthru
      _
    // Predicated region
    $region42: #{gcn_net_forward.1} parent=1 // pred_check
      _
    $region43: #{gcn_net_forward.1} parent=1 // pred_check_branch
      %1329 = sbr.rel (0) target = $region45
    $region44: #{gcn_net_forward.1} parent=1 // pred_region
      _
    $region45: #{gcn_net_forward.1} parent=1 // pred_fallthru
      _
    // Predicated region
    $region46: #{gcn_net_forward.1} parent=1 // pred_check
      _
    $region47: #{gcn_net_forward.1} parent=1 // pred_check_branch
      %1331 = sbr.rel (0) target = $region49
    $region48: #{gcn_net_forward.1} parent=1 // pred_region
      %1332 = dma.done [#allocation3], 16
    $region49: #{gcn_net_forward.1} parent=1 // pred_fallthru
      _
    %1333 = vsyncpa [#allocation3], 1

</llo_original>
